<compile_context>
chip_gen: v6e
topology: v6e:2x2x1
jax: 0.10.0
libtpu: 0.0.40
codegen_flags: <defaults>
</compile_context>

<pallas_src>
import functools

import jax
import jax.numpy as jnp
from jax.experimental import pallas as pl
from jax.experimental.pallas import tpu as pltpu


def _gather_reduce_kernel(ids_ref, table_ref, out_ref,
                          gbuf_ref, sem_ref, acc_ref,
                          *, operator, bg_rows, ts, seq_len, seq_pad):
    """One grid step: gather TS*BG embedding rows, fold into the accumulator.

    ids_ref   : [B_pad*S_pad] int32 in SMEM (scalar prefetch)
    table_ref : [V, H] embedding table, left in HBM (pl.ANY)
    out_ref   : [BG, H] output block for this batch group
    gbuf_ref  : [2, TS, BG, H] VMEM gather buffers (double-buffered)
    sem_ref   : [2] DMA semaphores (one per slot, shared by the slot's copies)
    acc_ref   : [BG, H] f32 accumulator (resident across the S chunks)
    """
    bg = pl.program_id(0)
    sc = pl.program_id(1)
    n_sc = pl.num_programs(1)
    slot = sc % 2

    def issue(chunk, slot_):
        for r in range(bg_rows):
            for t in range(ts):
                tok = ids_ref[(bg * bg_rows + r) * seq_pad + chunk * ts + t]
                pltpu.make_async_copy(
                    table_ref.at[tok],
                    gbuf_ref.at[slot_, t, r],
                    sem_ref.at[slot_],
                ).start()

    # Prime the pipeline on the first chunk of each batch group.
    @pl.when(sc == 0)
    def _():
        issue(sc, slot)

    # Prefetch the next chunk into the other slot while we reduce this one.
    @pl.when(sc + 1 < n_sc)
    def _():
        issue(sc + 1, 1 - slot)

    # Wait for this slot's TS*BG row copies (shared semaphore: each wait
    # consumes one row-copy's worth).
    for _ in range(bg_rows * ts):
        pltpu.make_async_copy(
            table_ref.at[0], gbuf_ref.at[slot, 0, 0], sem_ref.at[slot]
        ).wait()

    neutral = 0.0 if operator == "sum" else 1.0

    # Fold the TS gathered tokens with full (BG, H)-tile VPU ops (f32).
    part = None
    for t in range(ts):
        row = gbuf_ref[slot, t].astype(jnp.float32)          # (BG, H)
        if seq_pad != seq_len:
            valid = (sc * ts + t) < seq_len                   # scalar mask
            row = jnp.where(valid, row, neutral)
        if part is None:
            part = row
        elif operator == "sum":
            part = part + row
        else:
            part = part * row

    @pl.when(sc == 0)
    def _():
        acc_ref[...] = part

    @pl.when(sc != 0)
    def _():
        if operator == "sum":
            acc_ref[...] = acc_ref[...] + part
        else:
            acc_ref[...] = acc_ref[...] * part

    @pl.when(sc == n_sc - 1)
    def _():
        out_ref[...] = acc_ref[...].astype(out_ref.dtype)


def text_embedding_encoder(ids, table, *, operator="sum", tokens_per_step=None):
    """ids: [B, S] int token ids, table: [V, H] -> squeeze([B, H])."""
    B, S = ids.shape
    V, H = table.shape

    if operator not in ("sum", "mul"):
        # TODO(synk): 'concat' applies torch.cat to a *list* of embedding
        # outputs (multi-embedding TextEmbedding configs); a single-table
        # lookup has nothing to concatenate, so it is not implemented here.
        raise NotImplementedError(f"operator={operator!r}")

    bg_rows = min(B, 8)                      # sublane-dense output when B >= 8
    b_pad = ((B + bg_rows - 1) // bg_rows) * bg_rows
    ts = int(tokens_per_step) if tokens_per_step else max(1, min(S, 8))
    seq_pad = ((S + ts - 1) // ts) * ts

    # torch.nn.Embedding raises on out-of-range ids; here they are clamped so
    # the HBM row gather always stays in bounds.
    # TODO(synk): no in-kernel error signalling for invalid ids (torch raises).
    ids_i = jnp.clip(ids.astype(jnp.int32), 0, V - 1)
    if b_pad != B or seq_pad != S:
        ids_i = jnp.pad(ids_i, ((0, b_pad - B), (0, seq_pad - S)))
    ids_flat = ids_i.reshape(b_pad * seq_pad)

    kernel = functools.partial(
        _gather_reduce_kernel, operator=operator,
        bg_rows=bg_rows, ts=ts, seq_len=S, seq_pad=seq_pad)

    out = pl.pallas_call(
        kernel,
        out_shape=jax.ShapeDtypeStruct((b_pad, H), table.dtype),
        grid_spec=pltpu.PrefetchScalarGridSpec(
            num_scalar_prefetch=1,                       # ids -> SMEM
            grid=(b_pad // bg_rows, seq_pad // ts),      # reduction axis last
            in_specs=[pl.BlockSpec(memory_space=pl.ANY)],  # table stays in HBM
            out_specs=pl.BlockSpec((bg_rows, H), lambda bgi, sci, ids: (bgi, 0)),
            scratch_shapes=[
                pltpu.VMEM((2, ts, bg_rows, H), table.dtype),  # gather buffers
                pltpu.SemaphoreType.DMA((2,)),                 # one sem / slot
                pltpu.VMEM((bg_rows, H), jnp.float32),         # f32 accumulator
            ],
        ),
        compiler_params=pltpu.CompilerParams(
            dimension_semantics=("parallel", "arbitrary"),
        ),
    )(ids_flat, table)

    # matches `x.squeeze()` in the PyTorch forward
    return jnp.squeeze(out[:B])


if __name__ == "__main__":
    key = jax.random.PRNGKey(0)
    k_ids, k_tab = jax.random.split(key)

    B, S = 2, 8          # batch, sequence length
    V, H = 128, 256      # vocab size, hidden size (embedding dim)

    ids = jax.random.randint(k_ids, (B, S), 0, V, dtype=jnp.int32)
    # deterministic synthetic embedding table (the module's nn.Embedding weight)
    table = jax.random.normal(k_tab, (V, H), dtype=jnp.float32) * 0.5 + 1.0

    out_sum = jax.block_until_ready(text_embedding_encoder(ids, table, operator="sum"))
    out_mul = jax.block_until_ready(text_embedding_encoder(ids, table, operator="mul"))

    # plain-JAX reference check
    emb = table[ids]                               # (B, S, H)
    ref_sum = jnp.squeeze(emb.sum(axis=1))
    ref_mul = jnp.squeeze(jnp.prod(emb, axis=1))
    assert out_sum.shape == (B, H) and out_mul.shape == (B, H)
    assert jnp.allclose(out_sum, ref_sum, atol=1e-5, rtol=1e-5)
    assert jnp.allclose(out_mul, ref_mul, atol=1e-4, rtol=1e-4)

    print("KERNEL_OK")
</pallas_src>

<mosaic_0001>
module attributes {stable_mosaic.version = 11 : i64} {
  func.func @_gather_reduce_kernel(%arg0: i32, %arg1: i32, %arg2: memref<16xi32, #tpu.memory_space<smem>>, %arg3: memref<128x256xf32, #tpu.memory_space<any>>, %arg4: memref<2x256xf32, #tpu.memory_space<vmem>>, %arg5: memref<2x8x2x256xf32, #tpu.memory_space<vmem>>, %arg6: memref<2x!tpu.dma_semaphore, #tpu.memory_space<semaphore_mem>>, %arg7: memref<2x256xf32, #tpu.memory_space<vmem>>) attributes {dimension_semantics = [#tpu.dimension_semantics<parallel>, #tpu.dimension_semantics<arbitrary>], iteration_bounds = array<i64: 1, 1>, scalar_prefetch = 1 : i64, scratch_operands = 3 : i64, tpu.core_type = #tpu.core_type<tc>, window_params = [{}, {transform_indices = @transform_1, window_bounds = array<i64: 2, 256>}]} {
    %c2_i32 = arith.constant 2 : i32
    %c0_i32 = arith.constant 0 : i32
    %0 = arith.cmpi eq, %c2_i32, %c0_i32 : i32
    %c1_i32 = arith.constant 1 : i32
    %1 = arith.select %0, %c1_i32, %c2_i32 : i32
    %2 = arith.remsi %arg1, %1 : i32
    %c0_i32_0 = arith.constant 0 : i32
    %3 = arith.cmpi ne, %2, %c0_i32_0 : i32
    %c0_i32_1 = arith.constant 0 : i32
    %4 = arith.cmpi slt, %2, %c0_i32_1 : i32
    %c0_i32_2 = arith.constant 0 : i32
    %5 = arith.cmpi slt, %1, %c0_i32_2 : i32
    %6 = arith.xori %4, %5 : i1
    %7 = arith.andi %6, %3 : i1
    %8 = arith.addi %2, %1 : i32
    %9 = arith.select %7, %8, %2 : i32
    %c0_i32_3 = arith.constant 0 : i32
    %10 = arith.cmpi eq, %arg1, %c0_i32_3 : i32
    %11 = arith.extui %10 : i1 to i32
    %c0_i32_4 = arith.constant 0 : i32
    %12 = arith.cmpi ne, %11, %c0_i32_4 : i32
    scf.if %12 {
      %c2_i32_110 = arith.constant 2 : i32
      %153 = arith.muli %arg0, %c2_i32_110 : i32
      %c0_i32_111 = arith.constant 0 : i32
      %154 = arith.addi %153, %c0_i32_111 : i32
      %c8_i32 = arith.constant 8 : i32
      %155 = arith.muli %154, %c8_i32 : i32
      %c8_i32_112 = arith.constant 8 : i32
      %156 = arith.muli %arg1, %c8_i32_112 : i32
      %157 = arith.addi %155, %156 : i32
      %c0_i32_113 = arith.constant 0 : i32
      %158 = arith.addi %157, %c0_i32_113 : i32
      %159 = arith.index_cast %158 : i32 to index
      %160 = memref.load %arg2[%159] : memref<16xi32, #tpu.memory_space<smem>>
      %c0_i32_114 = arith.constant 0 : i32
      %c0_i32_115 = arith.constant 0 : i32
      %c0_i32_116 = arith.constant 0 : i32
      %161 = tpu.memref_slice %arg3[%160, %c0_i32_116] : memref<128x256xf32, #tpu.memory_space<any>> -> memref<1x256xf32, #tpu.memory_space<any>>
      %162 = tpu.memref_squeeze %161 : memref<1x256xf32, #tpu.memory_space<any>> -> memref<256xf32, #tpu.memory_space<any>>
      %c0_i32_117 = arith.constant 0 : i32
      %163 = tpu.memref_slice %arg5[%9, %c0_i32_114, %c0_i32_115, %c0_i32_117] : memref<2x8x2x256xf32, #tpu.memory_space<vmem>> -> memref<1x1x1x256xf32, #tpu.memory_space<vmem>>
      %164 = tpu.memref_squeeze %163 : memref<1x1x1x256xf32, #tpu.memory_space<vmem>> -> memref<256xf32, #tpu.memory_space<vmem>>
      %165 = tpu.memref_slice %arg6[%9] : memref<2x!tpu.dma_semaphore, #tpu.memory_space<semaphore_mem>> -> memref<1x!tpu.dma_semaphore, #tpu.memory_space<semaphore_mem>>
      %166 = tpu.memref_squeeze %165 : memref<1x!tpu.dma_semaphore, #tpu.memory_space<semaphore_mem>> -> memref<!tpu.dma_semaphore, #tpu.memory_space<semaphore_mem>>
      tpu.enqueue_dma source(%162 : memref<256xf32, #tpu.memory_space<any>>) target(%164 : memref<256xf32, #tpu.memory_space<vmem>>) target_semaphore(%166 : memref<!tpu.dma_semaphore, #tpu.memory_space<semaphore_mem>>)
      %c2_i32_118 = arith.constant 2 : i32
      %167 = arith.muli %arg0, %c2_i32_118 : i32
      %c0_i32_119 = arith.constant 0 : i32
      %168 = arith.addi %167, %c0_i32_119 : i32
      %c8_i32_120 = arith.constant 8 : i32
      %169 = arith.muli %168, %c8_i32_120 : i32
      %c8_i32_121 = arith.constant 8 : i32
      %170 = arith.muli %arg1, %c8_i32_121 : i32
      %171 = arith.addi %169, %170 : i32
      %c1_i32_122 = arith.constant 1 : i32
      %172 = arith.addi %171, %c1_i32_122 : i32
      %173 = arith.index_cast %172 : i32 to index
      %174 = memref.load %arg2[%173] : memref<16xi32, #tpu.memory_space<smem>>
      %c1_i32_123 = arith.constant 1 : i32
      %c0_i32_124 = arith.constant 0 : i32
      %c0_i32_125 = arith.constant 0 : i32
      %175 = tpu.memref_slice %arg3[%174, %c0_i32_125] : memref<128x256xf32, #tpu.memory_space<any>> -> memref<1x256xf32, #tpu.memory_space<any>>
      %176 = tpu.memref_squeeze %175 : memref<1x256xf32, #tpu.memory_space<any>> -> memref<256xf32, #tpu.memory_space<any>>
      %c0_i32_126 = arith.constant 0 : i32
      %177 = tpu.memref_slice %arg5[%9, %c1_i32_123, %c0_i32_124, %c0_i32_126] : memref<2x8x2x256xf32, #tpu.memory_space<vmem>> -> memref<1x1x1x256xf32, #tpu.memory_space<vmem>>
      %178 = tpu.memref_squeeze %177 : memref<1x1x1x256xf32, #tpu.memory_space<vmem>> -> memref<256xf32, #tpu.memory_space<vmem>>
      %179 = tpu.memref_slice %arg6[%9] : memref<2x!tpu.dma_semaphore, #tpu.memory_space<semaphore_mem>> -> memref<1x!tpu.dma_semaphore, #tpu.memory_space<semaphore_mem>>
      %180 = tpu.memref_squeeze %179 : memref<1x!tpu.dma_semaphore, #tpu.memory_space<semaphore_mem>> -> memref<!tpu.dma_semaphore, #tpu.memory_space<semaphore_mem>>
      tpu.enqueue_dma source(%176 : memref<256xf32, #tpu.memory_space<any>>) target(%178 : memref<256xf32, #tpu.memory_space<vmem>>) target_semaphore(%180 : memref<!tpu.dma_semaphore, #tpu.memory_space<semaphore_mem>>)
      %c2_i32_127 = arith.constant 2 : i32
      %181 = arith.muli %arg0, %c2_i32_127 : i32
      %c0_i32_128 = arith.constant 0 : i32
      %182 = arith.addi %181, %c0_i32_128 : i32
      %c8_i32_129 = arith.constant 8 : i32
      %183 = arith.muli %182, %c8_i32_129 : i32
      %c8_i32_130 = arith.constant 8 : i32
      %184 = arith.muli %arg1, %c8_i32_130 : i32
      %185 = arith.addi %183, %184 : i32
      %c2_i32_131 = arith.constant 2 : i32
      %186 = arith.addi %185, %c2_i32_131 : i32
      %187 = arith.index_cast %186 : i32 to index
      %188 = memref.load %arg2[%187] : memref<16xi32, #tpu.memory_space<smem>>
      %c2_i32_132 = arith.constant 2 : i32
      %c0_i32_133 = arith.constant 0 : i32
      %c0_i32_134 = arith.constant 0 : i32
      %189 = tpu.memref_slice %arg3[%188, %c0_i32_134] : memref<128x256xf32, #tpu.memory_space<any>> -> memref<1x256xf32, #tpu.memory_space<any>>
      %190 = tpu.memref_squeeze %189 : memref<1x256xf32, #tpu.memory_space<any>> -> memref<256xf32, #tpu.memory_space<any>>
      %c0_i32_135 = arith.constant 0 : i32
      %191 = tpu.memref_slice %arg5[%9, %c2_i32_132, %c0_i32_133, %c0_i32_135] : memref<2x8x2x256xf32, #tpu.memory_space<vmem>> -> memref<1x1x1x256xf32, #tpu.memory_space<vmem>>
      %192 = tpu.memref_squeeze %191 : memref<1x1x1x256xf32, #tpu.memory_space<vmem>> -> memref<256xf32, #tpu.memory_space<vmem>>
      %193 = tpu.memref_slice %arg6[%9] : memref<2x!tpu.dma_semaphore, #tpu.memory_space<semaphore_mem>> -> memref<1x!tpu.dma_semaphore, #tpu.memory_space<semaphore_mem>>
      %194 = tpu.memref_squeeze %193 : memref<1x!tpu.dma_semaphore, #tpu.memory_space<semaphore_mem>> -> memref<!tpu.dma_semaphore, #tpu.memory_space<semaphore_mem>>
      tpu.enqueue_dma source(%190 : memref<256xf32, #tpu.memory_space<any>>) target(%192 : memref<256xf32, #tpu.memory_space<vmem>>) target_semaphore(%194 : memref<!tpu.dma_semaphore, #tpu.memory_space<semaphore_mem>>)
      %c2_i32_136 = arith.constant 2 : i32
      %195 = arith.muli %arg0, %c2_i32_136 : i32
      %c0_i32_137 = arith.constant 0 : i32
      %196 = arith.addi %195, %c0_i32_137 : i32
      %c8_i32_138 = arith.constant 8 : i32
      %197 = arith.muli %196, %c8_i32_138 : i32
      %c8_i32_139 = arith.constant 8 : i32
      %198 = arith.muli %arg1, %c8_i32_139 : i32
      %199 = arith.addi %197, %198 : i32
      %c3_i32 = arith.constant 3 : i32
      %200 = arith.addi %199, %c3_i32 : i32
      %201 = arith.index_cast %200 : i32 to index
      %202 = memref.load %arg2[%201] : memref<16xi32, #tpu.memory_space<smem>>
      %c3_i32_140 = arith.constant 3 : i32
      %c0_i32_141 = arith.constant 0 : i32
      %c0_i32_142 = arith.constant 0 : i32
      %203 = tpu.memref_slice %arg3[%202, %c0_i32_142] : memref<128x256xf32, #tpu.memory_space<any>> -> memref<1x256xf32, #tpu.memory_space<any>>
      %204 = tpu.memref_squeeze %203 : memref<1x256xf32, #tpu.memory_space<any>> -> memref<256xf32, #tpu.memory_space<any>>
      %c0_i32_143 = arith.constant 0 : i32
      %205 = tpu.memref_slice %arg5[%9, %c3_i32_140, %c0_i32_141, %c0_i32_143] : memref<2x8x2x256xf32, #tpu.memory_space<vmem>> -> memref<1x1x1x256xf32, #tpu.memory_space<vmem>>
      %206 = tpu.memref_squeeze %205 : memref<1x1x1x256xf32, #tpu.memory_space<vmem>> -> memref<256xf32, #tpu.memory_space<vmem>>
      %207 = tpu.memref_slice %arg6[%9] : memref<2x!tpu.dma_semaphore, #tpu.memory_space<semaphore_mem>> -> memref<1x!tpu.dma_semaphore, #tpu.memory_space<semaphore_mem>>
      %208 = tpu.memref_squeeze %207 : memref<1x!tpu.dma_semaphore, #tpu.memory_space<semaphore_mem>> -> memref<!tpu.dma_semaphore, #tpu.memory_space<semaphore_mem>>
      tpu.enqueue_dma source(%204 : memref<256xf32, #tpu.memory_space<any>>) target(%206 : memref<256xf32, #tpu.memory_space<vmem>>) target_semaphore(%208 : memref<!tpu.dma_semaphore, #tpu.memory_space<semaphore_mem>>)
      %c2_i32_144 = arith.constant 2 : i32
      %209 = arith.muli %arg0, %c2_i32_144 : i32
      %c0_i32_145 = arith.constant 0 : i32
      %210 = arith.addi %209, %c0_i32_145 : i32
      %c8_i32_146 = arith.constant 8 : i32
      %211 = arith.muli %210, %c8_i32_146 : i32
      %c8_i32_147 = arith.constant 8 : i32
      %212 = arith.muli %arg1, %c8_i32_147 : i32
      %213 = arith.addi %211, %212 : i32
      %c4_i32 = arith.constant 4 : i32
      %214 = arith.addi %213, %c4_i32 : i32
      %215 = arith.index_cast %214 : i32 to index
      %216 = memref.load %arg2[%215] : memref<16xi32, #tpu.memory_space<smem>>
      %c4_i32_148 = arith.constant 4 : i32
      %c0_i32_149 = arith.constant 0 : i32
      %c0_i32_150 = arith.constant 0 : i32
      %217 = tpu.memref_slice %arg3[%216, %c0_i32_150] : memref<128x256xf32, #tpu.memory_space<any>> -> memref<1x256xf32, #tpu.memory_space<any>>
      %218 = tpu.memref_squeeze %217 : memref<1x256xf32, #tpu.memory_space<any>> -> memref<256xf32, #tpu.memory_space<any>>
      %c0_i32_151 = arith.constant 0 : i32
      %219 = tpu.memref_slice %arg5[%9, %c4_i32_148, %c0_i32_149, %c0_i32_151] : memref<2x8x2x256xf32, #tpu.memory_space<vmem>> -> memref<1x1x1x256xf32, #tpu.memory_space<vmem>>
      %220 = tpu.memref_squeeze %219 : memref<1x1x1x256xf32, #tpu.memory_space<vmem>> -> memref<256xf32, #tpu.memory_space<vmem>>
      %221 = tpu.memref_slice %arg6[%9] : memref<2x!tpu.dma_semaphore, #tpu.memory_space<semaphore_mem>> -> memref<1x!tpu.dma_semaphore, #tpu.memory_space<semaphore_mem>>
      %222 = tpu.memref_squeeze %221 : memref<1x!tpu.dma_semaphore, #tpu.memory_space<semaphore_mem>> -> memref<!tpu.dma_semaphore, #tpu.memory_space<semaphore_mem>>
      tpu.enqueue_dma source(%218 : memref<256xf32, #tpu.memory_space<any>>) target(%220 : memref<256xf32, #tpu.memory_space<vmem>>) target_semaphore(%222 : memref<!tpu.dma_semaphore, #tpu.memory_space<semaphore_mem>>)
      %c2_i32_152 = arith.constant 2 : i32
      %223 = arith.muli %arg0, %c2_i32_152 : i32
      %c0_i32_153 = arith.constant 0 : i32
      %224 = arith.addi %223, %c0_i32_153 : i32
      %c8_i32_154 = arith.constant 8 : i32
      %225 = arith.muli %224, %c8_i32_154 : i32
      %c8_i32_155 = arith.constant 8 : i32
      %226 = arith.muli %arg1, %c8_i32_155 : i32
      %227 = arith.addi %225, %226 : i32
      %c5_i32 = arith.constant 5 : i32
      %228 = arith.addi %227, %c5_i32 : i32
      %229 = arith.index_cast %228 : i32 to index
      %230 = memref.load %arg2[%229] : memref<16xi32, #tpu.memory_space<smem>>
      %c5_i32_156 = arith.constant 5 : i32
      %c0_i32_157 = arith.constant 0 : i32
      %c0_i32_158 = arith.constant 0 : i32
      %231 = tpu.memref_slice %arg3[%230, %c0_i32_158] : memref<128x256xf32, #tpu.memory_space<any>> -> memref<1x256xf32, #tpu.memory_space<any>>
      %232 = tpu.memref_squeeze %231 : memref<1x256xf32, #tpu.memory_space<any>> -> memref<256xf32, #tpu.memory_space<any>>
      %c0_i32_159 = arith.constant 0 : i32
      %233 = tpu.memref_slice %arg5[%9, %c5_i32_156, %c0_i32_157, %c0_i32_159] : memref<2x8x2x256xf32, #tpu.memory_space<vmem>> -> memref<1x1x1x256xf32, #tpu.memory_space<vmem>>
      %234 = tpu.memref_squeeze %233 : memref<1x1x1x256xf32, #tpu.memory_space<vmem>> -> memref<256xf32, #tpu.memory_space<vmem>>
      %235 = tpu.memref_slice %arg6[%9] : memref<2x!tpu.dma_semaphore, #tpu.memory_space<semaphore_mem>> -> memref<1x!tpu.dma_semaphore, #tpu.memory_space<semaphore_mem>>
      %236 = tpu.memref_squeeze %235 : memref<1x!tpu.dma_semaphore, #tpu.memory_space<semaphore_mem>> -> memref<!tpu.dma_semaphore, #tpu.memory_space<semaphore_mem>>
      tpu.enqueue_dma source(%232 : memref<256xf32, #tpu.memory_space<any>>) target(%234 : memref<256xf32, #tpu.memory_space<vmem>>) target_semaphore(%236 : memref<!tpu.dma_semaphore, #tpu.memory_space<semaphore_mem>>)
      %c2_i32_160 = arith.constant 2 : i32
      %237 = arith.muli %arg0, %c2_i32_160 : i32
      %c0_i32_161 = arith.constant 0 : i32
      %238 = arith.addi %237, %c0_i32_161 : i32
      %c8_i32_162 = arith.constant 8 : i32
      %239 = arith.muli %238, %c8_i32_162 : i32
      %c8_i32_163 = arith.constant 8 : i32
      %240 = arith.muli %arg1, %c8_i32_163 : i32
      %241 = arith.addi %239, %240 : i32
      %c6_i32 = arith.constant 6 : i32
      %242 = arith.addi %241, %c6_i32 : i32
      %243 = arith.index_cast %242 : i32 to index
      %244 = memref.load %arg2[%243] : memref<16xi32, #tpu.memory_space<smem>>
      %c6_i32_164 = arith.constant 6 : i32
      %c0_i32_165 = arith.constant 0 : i32
      %c0_i32_166 = arith.constant 0 : i32
      %245 = tpu.memref_slice %arg3[%244, %c0_i32_166] : memref<128x256xf32, #tpu.memory_space<any>> -> memref<1x256xf32, #tpu.memory_space<any>>
      %246 = tpu.memref_squeeze %245 : memref<1x256xf32, #tpu.memory_space<any>> -> memref<256xf32, #tpu.memory_space<any>>
      %c0_i32_167 = arith.constant 0 : i32
      %247 = tpu.memref_slice %arg5[%9, %c6_i32_164, %c0_i32_165, %c0_i32_167] : memref<2x8x2x256xf32, #tpu.memory_space<vmem>> -> memref<1x1x1x256xf32, #tpu.memory_space<vmem>>
      %248 = tpu.memref_squeeze %247 : memref<1x1x1x256xf32, #tpu.memory_space<vmem>> -> memref<256xf32, #tpu.memory_space<vmem>>
      %249 = tpu.memref_slice %arg6[%9] : memref<2x!tpu.dma_semaphore, #tpu.memory_space<semaphore_mem>> -> memref<1x!tpu.dma_semaphore, #tpu.memory_space<semaphore_mem>>
      %250 = tpu.memref_squeeze %249 : memref<1x!tpu.dma_semaphore, #tpu.memory_space<semaphore_mem>> -> memref<!tpu.dma_semaphore, #tpu.memory_space<semaphore_mem>>
      tpu.enqueue_dma source(%246 : memref<256xf32, #tpu.memory_space<any>>) target(%248 : memref<256xf32, #tpu.memory_space<vmem>>) target_semaphore(%250 : memref<!tpu.dma_semaphore, #tpu.memory_space<semaphore_mem>>)
      %c2_i32_168 = arith.constant 2 : i32
      %251 = arith.muli %arg0, %c2_i32_168 : i32
      %c0_i32_169 = arith.constant 0 : i32
      %252 = arith.addi %251, %c0_i32_169 : i32
      %c8_i32_170 = arith.constant 8 : i32
      %253 = arith.muli %252, %c8_i32_170 : i32
      %c8_i32_171 = arith.constant 8 : i32
      %254 = arith.muli %arg1, %c8_i32_171 : i32
      %255 = arith.addi %253, %254 : i32
      %c7_i32 = arith.constant 7 : i32
      %256 = arith.addi %255, %c7_i32 : i32
      %257 = arith.index_cast %256 : i32 to index
      %258 = memref.load %arg2[%257] : memref<16xi32, #tpu.memory_space<smem>>
      %c7_i32_172 = arith.constant 7 : i32
      %c0_i32_173 = arith.constant 0 : i32
      %c0_i32_174 = arith.constant 0 : i32
      %259 = tpu.memref_slice %arg3[%258, %c0_i32_174] : memref<128x256xf32, #tpu.memory_space<any>> -> memref<1x256xf32, #tpu.memory_space<any>>
      %260 = tpu.memref_squeeze %259 : memref<1x256xf32, #tpu.memory_space<any>> -> memref<256xf32, #tpu.memory_space<any>>
      %c0_i32_175 = arith.constant 0 : i32
      %261 = tpu.memref_slice %arg5[%9, %c7_i32_172, %c0_i32_173, %c0_i32_175] : memref<2x8x2x256xf32, #tpu.memory_space<vmem>> -> memref<1x1x1x256xf32, #tpu.memory_space<vmem>>
      %262 = tpu.memref_squeeze %261 : memref<1x1x1x256xf32, #tpu.memory_space<vmem>> -> memref<256xf32, #tpu.memory_space<vmem>>
      %263 = tpu.memref_slice %arg6[%9] : memref<2x!tpu.dma_semaphore, #tpu.memory_space<semaphore_mem>> -> memref<1x!tpu.dma_semaphore, #tpu.memory_space<semaphore_mem>>
      %264 = tpu.memref_squeeze %263 : memref<1x!tpu.dma_semaphore, #tpu.memory_space<semaphore_mem>> -> memref<!tpu.dma_semaphore, #tpu.memory_space<semaphore_mem>>
      tpu.enqueue_dma source(%260 : memref<256xf32, #tpu.memory_space<any>>) target(%262 : memref<256xf32, #tpu.memory_space<vmem>>) target_semaphore(%264 : memref<!tpu.dma_semaphore, #tpu.memory_space<semaphore_mem>>)
      %c2_i32_176 = arith.constant 2 : i32
      %265 = arith.muli %arg0, %c2_i32_176 : i32
      %c1_i32_177 = arith.constant 1 : i32
      %266 = arith.addi %265, %c1_i32_177 : i32
      %c8_i32_178 = arith.constant 8 : i32
      %267 = arith.muli %266, %c8_i32_178 : i32
      %c8_i32_179 = arith.constant 8 : i32
      %268 = arith.muli %arg1, %c8_i32_179 : i32
      %269 = arith.addi %267, %268 : i32
      %c0_i32_180 = arith.constant 0 : i32
      %270 = arith.addi %269, %c0_i32_180 : i32
      %271 = arith.index_cast %270 : i32 to index
      %272 = memref.load %arg2[%271] : memref<16xi32, #tpu.memory_space<smem>>
      %c0_i32_181 = arith.constant 0 : i32
      %c1_i32_182 = arith.constant 1 : i32
      %c0_i32_183 = arith.constant 0 : i32
      %273 = tpu.memref_slice %arg3[%272, %c0_i32_183] : memref<128x256xf32, #tpu.memory_space<any>> -> memref<1x256xf32, #tpu.memory_space<any>>
      %274 = tpu.memref_squeeze %273 : memref<1x256xf32, #tpu.memory_space<any>> -> memref<256xf32, #tpu.memory_space<any>>
      %c0_i32_184 = arith.constant 0 : i32
      %275 = tpu.memref_slice %arg5[%9, %c0_i32_181, %c1_i32_182, %c0_i32_184] : memref<2x8x2x256xf32, #tpu.memory_space<vmem>> -> memref<1x1x1x256xf32, #tpu.memory_space<vmem>>
      %276 = tpu.memref_squeeze %275 : memref<1x1x1x256xf32, #tpu.memory_space<vmem>> -> memref<256xf32, #tpu.memory_space<vmem>>
      %277 = tpu.memref_slice %arg6[%9] : memref<2x!tpu.dma_semaphore, #tpu.memory_space<semaphore_mem>> -> memref<1x!tpu.dma_semaphore, #tpu.memory_space<semaphore_mem>>
      %278 = tpu.memref_squeeze %277 : memref<1x!tpu.dma_semaphore, #tpu.memory_space<semaphore_mem>> -> memref<!tpu.dma_semaphore, #tpu.memory_space<semaphore_mem>>
      tpu.enqueue_dma source(%274 : memref<256xf32, #tpu.memory_space<any>>) target(%276 : memref<256xf32, #tpu.memory_space<vmem>>) target_semaphore(%278 : memref<!tpu.dma_semaphore, #tpu.memory_space<semaphore_mem>>)
      %c2_i32_185 = arith.constant 2 : i32
      %279 = arith.muli %arg0, %c2_i32_185 : i32
      %c1_i32_186 = arith.constant 1 : i32
      %280 = arith.addi %279, %c1_i32_186 : i32
      %c8_i32_187 = arith.constant 8 : i32
      %281 = arith.muli %280, %c8_i32_187 : i32
      %c8_i32_188 = arith.constant 8 : i32
      %282 = arith.muli %arg1, %c8_i32_188 : i32
      %283 = arith.addi %281, %282 : i32
      %c1_i32_189 = arith.constant 1 : i32
      %284 = arith.addi %283, %c1_i32_189 : i32
      %285 = arith.index_cast %284 : i32 to index
      %286 = memref.load %arg2[%285] : memref<16xi32, #tpu.memory_space<smem>>
      %c1_i32_190 = arith.constant 1 : i32
      %c1_i32_191 = arith.constant 1 : i32
      %c0_i32_192 = arith.constant 0 : i32
      %287 = tpu.memref_slice %arg3[%286, %c0_i32_192] : memref<128x256xf32, #tpu.memory_space<any>> -> memref<1x256xf32, #tpu.memory_space<any>>
      %288 = tpu.memref_squeeze %287 : memref<1x256xf32, #tpu.memory_space<any>> -> memref<256xf32, #tpu.memory_space<any>>
      %c0_i32_193 = arith.constant 0 : i32
      %289 = tpu.memref_slice %arg5[%9, %c1_i32_190, %c1_i32_191, %c0_i32_193] : memref<2x8x2x256xf32, #tpu.memory_space<vmem>> -> memref<1x1x1x256xf32, #tpu.memory_space<vmem>>
      %290 = tpu.memref_squeeze %289 : memref<1x1x1x256xf32, #tpu.memory_space<vmem>> -> memref<256xf32, #tpu.memory_space<vmem>>
      %291 = tpu.memref_slice %arg6[%9] : memref<2x!tpu.dma_semaphore, #tpu.memory_space<semaphore_mem>> -> memref<1x!tpu.dma_semaphore, #tpu.memory_space<semaphore_mem>>
      %292 = tpu.memref_squeeze %291 : memref<1x!tpu.dma_semaphore, #tpu.memory_space<semaphore_mem>> -> memref<!tpu.dma_semaphore, #tpu.memory_space<semaphore_mem>>
      tpu.enqueue_dma source(%288 : memref<256xf32, #tpu.memory_space<any>>) target(%290 : memref<256xf32, #tpu.memory_space<vmem>>) target_semaphore(%292 : memref<!tpu.dma_semaphore, #tpu.memory_space<semaphore_mem>>)
      %c2_i32_194 = arith.constant 2 : i32
      %293 = arith.muli %arg0, %c2_i32_194 : i32
      %c1_i32_195 = arith.constant 1 : i32
      %294 = arith.addi %293, %c1_i32_195 : i32
      %c8_i32_196 = arith.constant 8 : i32
      %295 = arith.muli %294, %c8_i32_196 : i32
      %c8_i32_197 = arith.constant 8 : i32
      %296 = arith.muli %arg1, %c8_i32_197 : i32
      %297 = arith.addi %295, %296 : i32
      %c2_i32_198 = arith.constant 2 : i32
      %298 = arith.addi %297, %c2_i32_198 : i32
      %299 = arith.index_cast %298 : i32 to index
      %300 = memref.load %arg2[%299] : memref<16xi32, #tpu.memory_space<smem>>
      %c2_i32_199 = arith.constant 2 : i32
      %c1_i32_200 = arith.constant 1 : i32
      %c0_i32_201 = arith.constant 0 : i32
      %301 = tpu.memref_slice %arg3[%300, %c0_i32_201] : memref<128x256xf32, #tpu.memory_space<any>> -> memref<1x256xf32, #tpu.memory_space<any>>
      %302 = tpu.memref_squeeze %301 : memref<1x256xf32, #tpu.memory_space<any>> -> memref<256xf32, #tpu.memory_space<any>>
      %c0_i32_202 = arith.constant 0 : i32
      %303 = tpu.memref_slice %arg5[%9, %c2_i32_199, %c1_i32_200, %c0_i32_202] : memref<2x8x2x256xf32, #tpu.memory_space<vmem>> -> memref<1x1x1x256xf32, #tpu.memory_space<vmem>>
      %304 = tpu.memref_squeeze %303 : memref<1x1x1x256xf32, #tpu.memory_space<vmem>> -> memref<256xf32, #tpu.memory_space<vmem>>
      %305 = tpu.memref_slice %arg6[%9] : memref<2x!tpu.dma_semaphore, #tpu.memory_space<semaphore_mem>> -> memref<1x!tpu.dma_semaphore, #tpu.memory_space<semaphore_mem>>
      %306 = tpu.memref_squeeze %305 : memref<1x!tpu.dma_semaphore, #tpu.memory_space<semaphore_mem>> -> memref<!tpu.dma_semaphore, #tpu.memory_space<semaphore_mem>>
      tpu.enqueue_dma source(%302 : memref<256xf32, #tpu.memory_space<any>>) target(%304 : memref<256xf32, #tpu.memory_space<vmem>>) target_semaphore(%306 : memref<!tpu.dma_semaphore, #tpu.memory_space<semaphore_mem>>)
      %c2_i32_203 = arith.constant 2 : i32
      %307 = arith.muli %arg0, %c2_i32_203 : i32
      %c1_i32_204 = arith.constant 1 : i32
      %308 = arith.addi %307, %c1_i32_204 : i32
      %c8_i32_205 = arith.constant 8 : i32
      %309 = arith.muli %308, %c8_i32_205 : i32
      %c8_i32_206 = arith.constant 8 : i32
      %310 = arith.muli %arg1, %c8_i32_206 : i32
      %311 = arith.addi %309, %310 : i32
      %c3_i32_207 = arith.constant 3 : i32
      %312 = arith.addi %311, %c3_i32_207 : i32
      %313 = arith.index_cast %312 : i32 to index
      %314 = memref.load %arg2[%313] : memref<16xi32, #tpu.memory_space<smem>>
      %c3_i32_208 = arith.constant 3 : i32
      %c1_i32_209 = arith.constant 1 : i32
      %c0_i32_210 = arith.constant 0 : i32
      %315 = tpu.memref_slice %arg3[%314, %c0_i32_210] : memref<128x256xf32, #tpu.memory_space<any>> -> memref<1x256xf32, #tpu.memory_space<any>>
      %316 = tpu.memref_squeeze %315 : memref<1x256xf32, #tpu.memory_space<any>> -> memref<256xf32, #tpu.memory_space<any>>
      %c0_i32_211 = arith.constant 0 : i32
      %317 = tpu.memref_slice %arg5[%9, %c3_i32_208, %c1_i32_209, %c0_i32_211] : memref<2x8x2x256xf32, #tpu.memory_space<vmem>> -> memref<1x1x1x256xf32, #tpu.memory_space<vmem>>
      %318 = tpu.memref_squeeze %317 : memref<1x1x1x256xf32, #tpu.memory_space<vmem>> -> memref<256xf32, #tpu.memory_space<vmem>>
      %319 = tpu.memref_slice %arg6[%9] : memref<2x!tpu.dma_semaphore, #tpu.memory_space<semaphore_mem>> -> memref<1x!tpu.dma_semaphore, #tpu.memory_space<semaphore_mem>>
      %320 = tpu.memref_squeeze %319 : memref<1x!tpu.dma_semaphore, #tpu.memory_space<semaphore_mem>> -> memref<!tpu.dma_semaphore, #tpu.memory_space<semaphore_mem>>
      tpu.enqueue_dma source(%316 : memref<256xf32, #tpu.memory_space<any>>) target(%318 : memref<256xf32, #tpu.memory_space<vmem>>) target_semaphore(%320 : memref<!tpu.dma_semaphore, #tpu.memory_space<semaphore_mem>>)
      %c2_i32_212 = arith.constant 2 : i32
      %321 = arith.muli %arg0, %c2_i32_212 : i32
      %c1_i32_213 = arith.constant 1 : i32
      %322 = arith.addi %321, %c1_i32_213 : i32
      %c8_i32_214 = arith.constant 8 : i32
      %323 = arith.muli %322, %c8_i32_214 : i32
      %c8_i32_215 = arith.constant 8 : i32
      %324 = arith.muli %arg1, %c8_i32_215 : i32
      %325 = arith.addi %323, %324 : i32
      %c4_i32_216 = arith.constant 4 : i32
      %326 = arith.addi %325, %c4_i32_216 : i32
      %327 = arith.index_cast %326 : i32 to index
      %328 = memref.load %arg2[%327] : memref<16xi32, #tpu.memory_space<smem>>
      %c4_i32_217 = arith.constant 4 : i32
      %c1_i32_218 = arith.constant 1 : i32
      %c0_i32_219 = arith.constant 0 : i32
      %329 = tpu.memref_slice %arg3[%328, %c0_i32_219] : memref<128x256xf32, #tpu.memory_space<any>> -> memref<1x256xf32, #tpu.memory_space<any>>
      %330 = tpu.memref_squeeze %329 : memref<1x256xf32, #tpu.memory_space<any>> -> memref<256xf32, #tpu.memory_space<any>>
      %c0_i32_220 = arith.constant 0 : i32
      %331 = tpu.memref_slice %arg5[%9, %c4_i32_217, %c1_i32_218, %c0_i32_220] : memref<2x8x2x256xf32, #tpu.memory_space<vmem>> -> memref<1x1x1x256xf32, #tpu.memory_space<vmem>>
      %332 = tpu.memref_squeeze %331 : memref<1x1x1x256xf32, #tpu.memory_space<vmem>> -> memref<256xf32, #tpu.memory_space<vmem>>
      %333 = tpu.memref_slice %arg6[%9] : memref<2x!tpu.dma_semaphore, #tpu.memory_space<semaphore_mem>> -> memref<1x!tpu.dma_semaphore, #tpu.memory_space<semaphore_mem>>
      %334 = tpu.memref_squeeze %333 : memref<1x!tpu.dma_semaphore, #tpu.memory_space<semaphore_mem>> -> memref<!tpu.dma_semaphore, #tpu.memory_space<semaphore_mem>>
      tpu.enqueue_dma source(%330 : memref<256xf32, #tpu.memory_space<any>>) target(%332 : memref<256xf32, #tpu.memory_space<vmem>>) target_semaphore(%334 : memref<!tpu.dma_semaphore, #tpu.memory_space<semaphore_mem>>)
      %c2_i32_221 = arith.constant 2 : i32
      %335 = arith.muli %arg0, %c2_i32_221 : i32
      %c1_i32_222 = arith.constant 1 : i32
      %336 = arith.addi %335, %c1_i32_222 : i32
      %c8_i32_223 = arith.constant 8 : i32
      %337 = arith.muli %336, %c8_i32_223 : i32
      %c8_i32_224 = arith.constant 8 : i32
      %338 = arith.muli %arg1, %c8_i32_224 : i32
      %339 = arith.addi %337, %338 : i32
      %c5_i32_225 = arith.constant 5 : i32
      %340 = arith.addi %339, %c5_i32_225 : i32
      %341 = arith.index_cast %340 : i32 to index
      %342 = memref.load %arg2[%341] : memref<16xi32, #tpu.memory_space<smem>>
      %c5_i32_226 = arith.constant 5 : i32
      %c1_i32_227 = arith.constant 1 : i32
      %c0_i32_228 = arith.constant 0 : i32
      %343 = tpu.memref_slice %arg3[%342, %c0_i32_228] : memref<128x256xf32, #tpu.memory_space<any>> -> memref<1x256xf32, #tpu.memory_space<any>>
      %344 = tpu.memref_squeeze %343 : memref<1x256xf32, #tpu.memory_space<any>> -> memref<256xf32, #tpu.memory_space<any>>
      %c0_i32_229 = arith.constant 0 : i32
      %345 = tpu.memref_slice %arg5[%9, %c5_i32_226, %c1_i32_227, %c0_i32_229] : memref<2x8x2x256xf32, #tpu.memory_space<vmem>> -> memref<1x1x1x256xf32, #tpu.memory_space<vmem>>
      %346 = tpu.memref_squeeze %345 : memref<1x1x1x256xf32, #tpu.memory_space<vmem>> -> memref<256xf32, #tpu.memory_space<vmem>>
      %347 = tpu.memref_slice %arg6[%9] : memref<2x!tpu.dma_semaphore, #tpu.memory_space<semaphore_mem>> -> memref<1x!tpu.dma_semaphore, #tpu.memory_space<semaphore_mem>>
      %348 = tpu.memref_squeeze %347 : memref<1x!tpu.dma_semaphore, #tpu.memory_space<semaphore_mem>> -> memref<!tpu.dma_semaphore, #tpu.memory_space<semaphore_mem>>
      tpu.enqueue_dma source(%344 : memref<256xf32, #tpu.memory_space<any>>) target(%346 : memref<256xf32, #tpu.memory_space<vmem>>) target_semaphore(%348 : memref<!tpu.dma_semaphore, #tpu.memory_space<semaphore_mem>>)
      %c2_i32_230 = arith.constant 2 : i32
      %349 = arith.muli %arg0, %c2_i32_230 : i32
      %c1_i32_231 = arith.constant 1 : i32
      %350 = arith.addi %349, %c1_i32_231 : i32
      %c8_i32_232 = arith.constant 8 : i32
      %351 = arith.muli %350, %c8_i32_232 : i32
      %c8_i32_233 = arith.constant 8 : i32
      %352 = arith.muli %arg1, %c8_i32_233 : i32
      %353 = arith.addi %351, %352 : i32
      %c6_i32_234 = arith.constant 6 : i32
      %354 = arith.addi %353, %c6_i32_234 : i32
      %355 = arith.index_cast %354 : i32 to index
      %356 = memref.load %arg2[%355] : memref<16xi32, #tpu.memory_space<smem>>
      %c6_i32_235 = arith.constant 6 : i32
      %c1_i32_236 = arith.constant 1 : i32
      %c0_i32_237 = arith.constant 0 : i32
      %357 = tpu.memref_slice %arg3[%356, %c0_i32_237] : memref<128x256xf32, #tpu.memory_space<any>> -> memref<1x256xf32, #tpu.memory_space<any>>
      %358 = tpu.memref_squeeze %357 : memref<1x256xf32, #tpu.memory_space<any>> -> memref<256xf32, #tpu.memory_space<any>>
      %c0_i32_238 = arith.constant 0 : i32
      %359 = tpu.memref_slice %arg5[%9, %c6_i32_235, %c1_i32_236, %c0_i32_238] : memref<2x8x2x256xf32, #tpu.memory_space<vmem>> -> memref<1x1x1x256xf32, #tpu.memory_space<vmem>>
      %360 = tpu.memref_squeeze %359 : memref<1x1x1x256xf32, #tpu.memory_space<vmem>> -> memref<256xf32, #tpu.memory_space<vmem>>
      %361 = tpu.memref_slice %arg6[%9] : memref<2x!tpu.dma_semaphore, #tpu.memory_space<semaphore_mem>> -> memref<1x!tpu.dma_semaphore, #tpu.memory_space<semaphore_mem>>
      %362 = tpu.memref_squeeze %361 : memref<1x!tpu.dma_semaphore, #tpu.memory_space<semaphore_mem>> -> memref<!tpu.dma_semaphore, #tpu.memory_space<semaphore_mem>>
      tpu.enqueue_dma source(%358 : memref<256xf32, #tpu.memory_space<any>>) target(%360 : memref<256xf32, #tpu.memory_space<vmem>>) target_semaphore(%362 : memref<!tpu.dma_semaphore, #tpu.memory_space<semaphore_mem>>)
      %c2_i32_239 = arith.constant 2 : i32
      %363 = arith.muli %arg0, %c2_i32_239 : i32
      %c1_i32_240 = arith.constant 1 : i32
      %364 = arith.addi %363, %c1_i32_240 : i32
      %c8_i32_241 = arith.constant 8 : i32
      %365 = arith.muli %364, %c8_i32_241 : i32
      %c8_i32_242 = arith.constant 8 : i32
      %366 = arith.muli %arg1, %c8_i32_242 : i32
      %367 = arith.addi %365, %366 : i32
      %c7_i32_243 = arith.constant 7 : i32
      %368 = arith.addi %367, %c7_i32_243 : i32
      %369 = arith.index_cast %368 : i32 to index
      %370 = memref.load %arg2[%369] : memref<16xi32, #tpu.memory_space<smem>>
      %c7_i32_244 = arith.constant 7 : i32
      %c1_i32_245 = arith.constant 1 : i32
      %c0_i32_246 = arith.constant 0 : i32
      %371 = tpu.memref_slice %arg3[%370, %c0_i32_246] : memref<128x256xf32, #tpu.memory_space<any>> -> memref<1x256xf32, #tpu.memory_space<any>>
      %372 = tpu.memref_squeeze %371 : memref<1x256xf32, #tpu.memory_space<any>> -> memref<256xf32, #tpu.memory_space<any>>
      %c0_i32_247 = arith.constant 0 : i32
      %373 = tpu.memref_slice %arg5[%9, %c7_i32_244, %c1_i32_245, %c0_i32_247] : memref<2x8x2x256xf32, #tpu.memory_space<vmem>> -> memref<1x1x1x256xf32, #tpu.memory_space<vmem>>
      %374 = tpu.memref_squeeze %373 : memref<1x1x1x256xf32, #tpu.memory_space<vmem>> -> memref<256xf32, #tpu.memory_space<vmem>>
      %375 = tpu.memref_slice %arg6[%9] : memref<2x!tpu.dma_semaphore, #tpu.memory_space<semaphore_mem>> -> memref<1x!tpu.dma_semaphore, #tpu.memory_space<semaphore_mem>>
      %376 = tpu.memref_squeeze %375 : memref<1x!tpu.dma_semaphore, #tpu.memory_space<semaphore_mem>> -> memref<!tpu.dma_semaphore, #tpu.memory_space<semaphore_mem>>
      tpu.enqueue_dma source(%372 : memref<256xf32, #tpu.memory_space<any>>) target(%374 : memref<256xf32, #tpu.memory_space<vmem>>) target_semaphore(%376 : memref<!tpu.dma_semaphore, #tpu.memory_space<semaphore_mem>>)
    } else {
    }
    %c1_i32_5 = arith.constant 1 : i32
    %13 = arith.addi %arg1, %c1_i32_5 : i32
    %c1_i32_6 = arith.constant 1 : i32
    %14 = arith.cmpi slt, %13, %c1_i32_6 : i32
    %15 = arith.extui %14 : i1 to i32
    %c0_i32_7 = arith.constant 0 : i32
    %16 = arith.cmpi ne, %15, %c0_i32_7 : i32
    scf.if %16 {
      %c1_i32_110 = arith.constant 1 : i32
      %153 = arith.addi %arg1, %c1_i32_110 : i32
      %c1_i32_111 = arith.constant 1 : i32
      %154 = arith.subi %c1_i32_111, %9 : i32
      %c2_i32_112 = arith.constant 2 : i32
      %155 = arith.muli %arg0, %c2_i32_112 : i32
      %c0_i32_113 = arith.constant 0 : i32
      %156 = arith.addi %155, %c0_i32_113 : i32
      %c8_i32 = arith.constant 8 : i32
      %157 = arith.muli %156, %c8_i32 : i32
      %c8_i32_114 = arith.constant 8 : i32
      %158 = arith.muli %153, %c8_i32_114 : i32
      %159 = arith.addi %157, %158 : i32
      %c0_i32_115 = arith.constant 0 : i32
      %160 = arith.addi %159, %c0_i32_115 : i32
      %161 = arith.index_cast %160 : i32 to index
      %162 = memref.load %arg2[%161] : memref<16xi32, #tpu.memory_space<smem>>
      %c0_i32_116 = arith.constant 0 : i32
      %c0_i32_117 = arith.constant 0 : i32
      %c0_i32_118 = arith.constant 0 : i32
      %163 = tpu.memref_slice %arg3[%162, %c0_i32_118] : memref<128x256xf32, #tpu.memory_space<any>> -> memref<1x256xf32, #tpu.memory_space<any>>
      %164 = tpu.memref_squeeze %163 : memref<1x256xf32, #tpu.memory_space<any>> -> memref<256xf32, #tpu.memory_space<any>>
      %c0_i32_119 = arith.constant 0 : i32
      %165 = tpu.memref_slice %arg5[%154, %c0_i32_116, %c0_i32_117, %c0_i32_119] : memref<2x8x2x256xf32, #tpu.memory_space<vmem>> -> memref<1x1x1x256xf32, #tpu.memory_space<vmem>>
      %166 = tpu.memref_squeeze %165 : memref<1x1x1x256xf32, #tpu.memory_space<vmem>> -> memref<256xf32, #tpu.memory_space<vmem>>
      %167 = tpu.memref_slice %arg6[%154] : memref<2x!tpu.dma_semaphore, #tpu.memory_space<semaphore_mem>> -> memref<1x!tpu.dma_semaphore, #tpu.memory_space<semaphore_mem>>
      %168 = tpu.memref_squeeze %167 : memref<1x!tpu.dma_semaphore, #tpu.memory_space<semaphore_mem>> -> memref<!tpu.dma_semaphore, #tpu.memory_space<semaphore_mem>>
      tpu.enqueue_dma source(%164 : memref<256xf32, #tpu.memory_space<any>>) target(%166 : memref<256xf32, #tpu.memory_space<vmem>>) target_semaphore(%168 : memref<!tpu.dma_semaphore, #tpu.memory_space<semaphore_mem>>)
      %c2_i32_120 = arith.constant 2 : i32
      %169 = arith.muli %arg0, %c2_i32_120 : i32
      %c0_i32_121 = arith.constant 0 : i32
      %170 = arith.addi %169, %c0_i32_121 : i32
      %c8_i32_122 = arith.constant 8 : i32
      %171 = arith.muli %170, %c8_i32_122 : i32
      %c8_i32_123 = arith.constant 8 : i32
      %172 = arith.muli %153, %c8_i32_123 : i32
      %173 = arith.addi %171, %172 : i32
      %c1_i32_124 = arith.constant 1 : i32
      %174 = arith.addi %173, %c1_i32_124 : i32
      %175 = arith.index_cast %174 : i32 to index
      %176 = memref.load %arg2[%175] : memref<16xi32, #tpu.memory_space<smem>>
      %c1_i32_125 = arith.constant 1 : i32
      %c0_i32_126 = arith.constant 0 : i32
      %c0_i32_127 = arith.constant 0 : i32
      %177 = tpu.memref_slice %arg3[%176, %c0_i32_127] : memref<128x256xf32, #tpu.memory_space<any>> -> memref<1x256xf32, #tpu.memory_space<any>>
      %178 = tpu.memref_squeeze %177 : memref<1x256xf32, #tpu.memory_space<any>> -> memref<256xf32, #tpu.memory_space<any>>
      %c0_i32_128 = arith.constant 0 : i32
      %179 = tpu.memref_slice %arg5[%154, %c1_i32_125, %c0_i32_126, %c0_i32_128] : memref<2x8x2x256xf32, #tpu.memory_space<vmem>> -> memref<1x1x1x256xf32, #tpu.memory_space<vmem>>
      %180 = tpu.memref_squeeze %179 : memref<1x1x1x256xf32, #tpu.memory_space<vmem>> -> memref<256xf32, #tpu.memory_space<vmem>>
      %181 = tpu.memref_slice %arg6[%154] : memref<2x!tpu.dma_semaphore, #tpu.memory_space<semaphore_mem>> -> memref<1x!tpu.dma_semaphore, #tpu.memory_space<semaphore_mem>>
      %182 = tpu.memref_squeeze %181 : memref<1x!tpu.dma_semaphore, #tpu.memory_space<semaphore_mem>> -> memref<!tpu.dma_semaphore, #tpu.memory_space<semaphore_mem>>
      tpu.enqueue_dma source(%178 : memref<256xf32, #tpu.memory_space<any>>) target(%180 : memref<256xf32, #tpu.memory_space<vmem>>) target_semaphore(%182 : memref<!tpu.dma_semaphore, #tpu.memory_space<semaphore_mem>>)
      %c2_i32_129 = arith.constant 2 : i32
      %183 = arith.muli %arg0, %c2_i32_129 : i32
      %c0_i32_130 = arith.constant 0 : i32
      %184 = arith.addi %183, %c0_i32_130 : i32
      %c8_i32_131 = arith.constant 8 : i32
      %185 = arith.muli %184, %c8_i32_131 : i32
      %c8_i32_132 = arith.constant 8 : i32
      %186 = arith.muli %153, %c8_i32_132 : i32
      %187 = arith.addi %185, %186 : i32
      %c2_i32_133 = arith.constant 2 : i32
      %188 = arith.addi %187, %c2_i32_133 : i32
      %189 = arith.index_cast %188 : i32 to index
      %190 = memref.load %arg2[%189] : memref<16xi32, #tpu.memory_space<smem>>
      %c2_i32_134 = arith.constant 2 : i32
      %c0_i32_135 = arith.constant 0 : i32
      %c0_i32_136 = arith.constant 0 : i32
      %191 = tpu.memref_slice %arg3[%190, %c0_i32_136] : memref<128x256xf32, #tpu.memory_space<any>> -> memref<1x256xf32, #tpu.memory_space<any>>
      %192 = tpu.memref_squeeze %191 : memref<1x256xf32, #tpu.memory_space<any>> -> memref<256xf32, #tpu.memory_space<any>>
      %c0_i32_137 = arith.constant 0 : i32
      %193 = tpu.memref_slice %arg5[%154, %c2_i32_134, %c0_i32_135, %c0_i32_137] : memref<2x8x2x256xf32, #tpu.memory_space<vmem>> -> memref<1x1x1x256xf32, #tpu.memory_space<vmem>>
      %194 = tpu.memref_squeeze %193 : memref<1x1x1x256xf32, #tpu.memory_space<vmem>> -> memref<256xf32, #tpu.memory_space<vmem>>
      %195 = tpu.memref_slice %arg6[%154] : memref<2x!tpu.dma_semaphore, #tpu.memory_space<semaphore_mem>> -> memref<1x!tpu.dma_semaphore, #tpu.memory_space<semaphore_mem>>
      %196 = tpu.memref_squeeze %195 : memref<1x!tpu.dma_semaphore, #tpu.memory_space<semaphore_mem>> -> memref<!tpu.dma_semaphore, #tpu.memory_space<semaphore_mem>>
      tpu.enqueue_dma source(%192 : memref<256xf32, #tpu.memory_space<any>>) target(%194 : memref<256xf32, #tpu.memory_space<vmem>>) target_semaphore(%196 : memref<!tpu.dma_semaphore, #tpu.memory_space<semaphore_mem>>)
      %c2_i32_138 = arith.constant 2 : i32
      %197 = arith.muli %arg0, %c2_i32_138 : i32
      %c0_i32_139 = arith.constant 0 : i32
      %198 = arith.addi %197, %c0_i32_139 : i32
      %c8_i32_140 = arith.constant 8 : i32
      %199 = arith.muli %198, %c8_i32_140 : i32
      %c8_i32_141 = arith.constant 8 : i32
      %200 = arith.muli %153, %c8_i32_141 : i32
      %201 = arith.addi %199, %200 : i32
      %c3_i32 = arith.constant 3 : i32
      %202 = arith.addi %201, %c3_i32 : i32
      %203 = arith.index_cast %202 : i32 to index
      %204 = memref.load %arg2[%203] : memref<16xi32, #tpu.memory_space<smem>>
      %c3_i32_142 = arith.constant 3 : i32
      %c0_i32_143 = arith.constant 0 : i32
      %c0_i32_144 = arith.constant 0 : i32
      %205 = tpu.memref_slice %arg3[%204, %c0_i32_144] : memref<128x256xf32, #tpu.memory_space<any>> -> memref<1x256xf32, #tpu.memory_space<any>>
      %206 = tpu.memref_squeeze %205 : memref<1x256xf32, #tpu.memory_space<any>> -> memref<256xf32, #tpu.memory_space<any>>
      %c0_i32_145 = arith.constant 0 : i32
      %207 = tpu.memref_slice %arg5[%154, %c3_i32_142, %c0_i32_143, %c0_i32_145] : memref<2x8x2x256xf32, #tpu.memory_space<vmem>> -> memref<1x1x1x256xf32, #tpu.memory_space<vmem>>
      %208 = tpu.memref_squeeze %207 : memref<1x1x1x256xf32, #tpu.memory_space<vmem>> -> memref<256xf32, #tpu.memory_space<vmem>>
      %209 = tpu.memref_slice %arg6[%154] : memref<2x!tpu.dma_semaphore, #tpu.memory_space<semaphore_mem>> -> memref<1x!tpu.dma_semaphore, #tpu.memory_space<semaphore_mem>>
      %210 = tpu.memref_squeeze %209 : memref<1x!tpu.dma_semaphore, #tpu.memory_space<semaphore_mem>> -> memref<!tpu.dma_semaphore, #tpu.memory_space<semaphore_mem>>
      tpu.enqueue_dma source(%206 : memref<256xf32, #tpu.memory_space<any>>) target(%208 : memref<256xf32, #tpu.memory_space<vmem>>) target_semaphore(%210 : memref<!tpu.dma_semaphore, #tpu.memory_space<semaphore_mem>>)
      %c2_i32_146 = arith.constant 2 : i32
      %211 = arith.muli %arg0, %c2_i32_146 : i32
      %c0_i32_147 = arith.constant 0 : i32
      %212 = arith.addi %211, %c0_i32_147 : i32
      %c8_i32_148 = arith.constant 8 : i32
      %213 = arith.muli %212, %c8_i32_148 : i32
      %c8_i32_149 = arith.constant 8 : i32
      %214 = arith.muli %153, %c8_i32_149 : i32
      %215 = arith.addi %213, %214 : i32
      %c4_i32 = arith.constant 4 : i32
      %216 = arith.addi %215, %c4_i32 : i32
      %217 = arith.index_cast %216 : i32 to index
      %218 = memref.load %arg2[%217] : memref<16xi32, #tpu.memory_space<smem>>
      %c4_i32_150 = arith.constant 4 : i32
      %c0_i32_151 = arith.constant 0 : i32
      %c0_i32_152 = arith.constant 0 : i32
      %219 = tpu.memref_slice %arg3[%218, %c0_i32_152] : memref<128x256xf32, #tpu.memory_space<any>> -> memref<1x256xf32, #tpu.memory_space<any>>
      %220 = tpu.memref_squeeze %219 : memref<1x256xf32, #tpu.memory_space<any>> -> memref<256xf32, #tpu.memory_space<any>>
      %c0_i32_153 = arith.constant 0 : i32
      %221 = tpu.memref_slice %arg5[%154, %c4_i32_150, %c0_i32_151, %c0_i32_153] : memref<2x8x2x256xf32, #tpu.memory_space<vmem>> -> memref<1x1x1x256xf32, #tpu.memory_space<vmem>>
      %222 = tpu.memref_squeeze %221 : memref<1x1x1x256xf32, #tpu.memory_space<vmem>> -> memref<256xf32, #tpu.memory_space<vmem>>
      %223 = tpu.memref_slice %arg6[%154] : memref<2x!tpu.dma_semaphore, #tpu.memory_space<semaphore_mem>> -> memref<1x!tpu.dma_semaphore, #tpu.memory_space<semaphore_mem>>
      %224 = tpu.memref_squeeze %223 : memref<1x!tpu.dma_semaphore, #tpu.memory_space<semaphore_mem>> -> memref<!tpu.dma_semaphore, #tpu.memory_space<semaphore_mem>>
      tpu.enqueue_dma source(%220 : memref<256xf32, #tpu.memory_space<any>>) target(%222 : memref<256xf32, #tpu.memory_space<vmem>>) target_semaphore(%224 : memref<!tpu.dma_semaphore, #tpu.memory_space<semaphore_mem>>)
      %c2_i32_154 = arith.constant 2 : i32
      %225 = arith.muli %arg0, %c2_i32_154 : i32
      %c0_i32_155 = arith.constant 0 : i32
      %226 = arith.addi %225, %c0_i32_155 : i32
      %c8_i32_156 = arith.constant 8 : i32
      %227 = arith.muli %226, %c8_i32_156 : i32
      %c8_i32_157 = arith.constant 8 : i32
      %228 = arith.muli %153, %c8_i32_157 : i32
      %229 = arith.addi %227, %228 : i32
      %c5_i32 = arith.constant 5 : i32
      %230 = arith.addi %229, %c5_i32 : i32
      %231 = arith.index_cast %230 : i32 to index
      %232 = memref.load %arg2[%231] : memref<16xi32, #tpu.memory_space<smem>>
      %c5_i32_158 = arith.constant 5 : i32
      %c0_i32_159 = arith.constant 0 : i32
      %c0_i32_160 = arith.constant 0 : i32
      %233 = tpu.memref_slice %arg3[%232, %c0_i32_160] : memref<128x256xf32, #tpu.memory_space<any>> -> memref<1x256xf32, #tpu.memory_space<any>>
      %234 = tpu.memref_squeeze %233 : memref<1x256xf32, #tpu.memory_space<any>> -> memref<256xf32, #tpu.memory_space<any>>
      %c0_i32_161 = arith.constant 0 : i32
      %235 = tpu.memref_slice %arg5[%154, %c5_i32_158, %c0_i32_159, %c0_i32_161] : memref<2x8x2x256xf32, #tpu.memory_space<vmem>> -> memref<1x1x1x256xf32, #tpu.memory_space<vmem>>
      %236 = tpu.memref_squeeze %235 : memref<1x1x1x256xf32, #tpu.memory_space<vmem>> -> memref<256xf32, #tpu.memory_space<vmem>>
      %237 = tpu.memref_slice %arg6[%154] : memref<2x!tpu.dma_semaphore, #tpu.memory_space<semaphore_mem>> -> memref<1x!tpu.dma_semaphore, #tpu.memory_space<semaphore_mem>>
      %238 = tpu.memref_squeeze %237 : memref<1x!tpu.dma_semaphore, #tpu.memory_space<semaphore_mem>> -> memref<!tpu.dma_semaphore, #tpu.memory_space<semaphore_mem>>
      tpu.enqueue_dma source(%234 : memref<256xf32, #tpu.memory_space<any>>) target(%236 : memref<256xf32, #tpu.memory_space<vmem>>) target_semaphore(%238 : memref<!tpu.dma_semaphore, #tpu.memory_space<semaphore_mem>>)
      %c2_i32_162 = arith.constant 2 : i32
      %239 = arith.muli %arg0, %c2_i32_162 : i32
      %c0_i32_163 = arith.constant 0 : i32
      %240 = arith.addi %239, %c0_i32_163 : i32
      %c8_i32_164 = arith.constant 8 : i32
      %241 = arith.muli %240, %c8_i32_164 : i32
      %c8_i32_165 = arith.constant 8 : i32
      %242 = arith.muli %153, %c8_i32_165 : i32
      %243 = arith.addi %241, %242 : i32
      %c6_i32 = arith.constant 6 : i32
      %244 = arith.addi %243, %c6_i32 : i32
      %245 = arith.index_cast %244 : i32 to index
      %246 = memref.load %arg2[%245] : memref<16xi32, #tpu.memory_space<smem>>
      %c6_i32_166 = arith.constant 6 : i32
      %c0_i32_167 = arith.constant 0 : i32
      %c0_i32_168 = arith.constant 0 : i32
      %247 = tpu.memref_slice %arg3[%246, %c0_i32_168] : memref<128x256xf32, #tpu.memory_space<any>> -> memref<1x256xf32, #tpu.memory_space<any>>
      %248 = tpu.memref_squeeze %247 : memref<1x256xf32, #tpu.memory_space<any>> -> memref<256xf32, #tpu.memory_space<any>>
      %c0_i32_169 = arith.constant 0 : i32
      %249 = tpu.memref_slice %arg5[%154, %c6_i32_166, %c0_i32_167, %c0_i32_169] : memref<2x8x2x256xf32, #tpu.memory_space<vmem>> -> memref<1x1x1x256xf32, #tpu.memory_space<vmem>>
      %250 = tpu.memref_squeeze %249 : memref<1x1x1x256xf32, #tpu.memory_space<vmem>> -> memref<256xf32, #tpu.memory_space<vmem>>
      %251 = tpu.memref_slice %arg6[%154] : memref<2x!tpu.dma_semaphore, #tpu.memory_space<semaphore_mem>> -> memref<1x!tpu.dma_semaphore, #tpu.memory_space<semaphore_mem>>
      %252 = tpu.memref_squeeze %251 : memref<1x!tpu.dma_semaphore, #tpu.memory_space<semaphore_mem>> -> memref<!tpu.dma_semaphore, #tpu.memory_space<semaphore_mem>>
      tpu.enqueue_dma source(%248 : memref<256xf32, #tpu.memory_space<any>>) target(%250 : memref<256xf32, #tpu.memory_space<vmem>>) target_semaphore(%252 : memref<!tpu.dma_semaphore, #tpu.memory_space<semaphore_mem>>)
      %c2_i32_170 = arith.constant 2 : i32
      %253 = arith.muli %arg0, %c2_i32_170 : i32
      %c0_i32_171 = arith.constant 0 : i32
      %254 = arith.addi %253, %c0_i32_171 : i32
      %c8_i32_172 = arith.constant 8 : i32
      %255 = arith.muli %254, %c8_i32_172 : i32
      %c8_i32_173 = arith.constant 8 : i32
      %256 = arith.muli %153, %c8_i32_173 : i32
      %257 = arith.addi %255, %256 : i32
      %c7_i32 = arith.constant 7 : i32
      %258 = arith.addi %257, %c7_i32 : i32
      %259 = arith.index_cast %258 : i32 to index
      %260 = memref.load %arg2[%259] : memref<16xi32, #tpu.memory_space<smem>>
      %c7_i32_174 = arith.constant 7 : i32
      %c0_i32_175 = arith.constant 0 : i32
      %c0_i32_176 = arith.constant 0 : i32
      %261 = tpu.memref_slice %arg3[%260, %c0_i32_176] : memref<128x256xf32, #tpu.memory_space<any>> -> memref<1x256xf32, #tpu.memory_space<any>>
      %262 = tpu.memref_squeeze %261 : memref<1x256xf32, #tpu.memory_space<any>> -> memref<256xf32, #tpu.memory_space<any>>
      %c0_i32_177 = arith.constant 0 : i32
      %263 = tpu.memref_slice %arg5[%154, %c7_i32_174, %c0_i32_175, %c0_i32_177] : memref<2x8x2x256xf32, #tpu.memory_space<vmem>> -> memref<1x1x1x256xf32, #tpu.memory_space<vmem>>
      %264 = tpu.memref_squeeze %263 : memref<1x1x1x256xf32, #tpu.memory_space<vmem>> -> memref<256xf32, #tpu.memory_space<vmem>>
      %265 = tpu.memref_slice %arg6[%154] : memref<2x!tpu.dma_semaphore, #tpu.memory_space<semaphore_mem>> -> memref<1x!tpu.dma_semaphore, #tpu.memory_space<semaphore_mem>>
      %266 = tpu.memref_squeeze %265 : memref<1x!tpu.dma_semaphore, #tpu.memory_space<semaphore_mem>> -> memref<!tpu.dma_semaphore, #tpu.memory_space<semaphore_mem>>
      tpu.enqueue_dma source(%262 : memref<256xf32, #tpu.memory_space<any>>) target(%264 : memref<256xf32, #tpu.memory_space<vmem>>) target_semaphore(%266 : memref<!tpu.dma_semaphore, #tpu.memory_space<semaphore_mem>>)
      %c2_i32_178 = arith.constant 2 : i32
      %267 = arith.muli %arg0, %c2_i32_178 : i32
      %c1_i32_179 = arith.constant 1 : i32
      %268 = arith.addi %267, %c1_i32_179 : i32
      %c8_i32_180 = arith.constant 8 : i32
      %269 = arith.muli %268, %c8_i32_180 : i32
      %c8_i32_181 = arith.constant 8 : i32
      %270 = arith.muli %153, %c8_i32_181 : i32
      %271 = arith.addi %269, %270 : i32
      %c0_i32_182 = arith.constant 0 : i32
      %272 = arith.addi %271, %c0_i32_182 : i32
      %273 = arith.index_cast %272 : i32 to index
      %274 = memref.load %arg2[%273] : memref<16xi32, #tpu.memory_space<smem>>
      %c0_i32_183 = arith.constant 0 : i32
      %c1_i32_184 = arith.constant 1 : i32
      %c0_i32_185 = arith.constant 0 : i32
      %275 = tpu.memref_slice %arg3[%274, %c0_i32_185] : memref<128x256xf32, #tpu.memory_space<any>> -> memref<1x256xf32, #tpu.memory_space<any>>
      %276 = tpu.memref_squeeze %275 : memref<1x256xf32, #tpu.memory_space<any>> -> memref<256xf32, #tpu.memory_space<any>>
      %c0_i32_186 = arith.constant 0 : i32
      %277 = tpu.memref_slice %arg5[%154, %c0_i32_183, %c1_i32_184, %c0_i32_186] : memref<2x8x2x256xf32, #tpu.memory_space<vmem>> -> memref<1x1x1x256xf32, #tpu.memory_space<vmem>>
      %278 = tpu.memref_squeeze %277 : memref<1x1x1x256xf32, #tpu.memory_space<vmem>> -> memref<256xf32, #tpu.memory_space<vmem>>
      %279 = tpu.memref_slice %arg6[%154] : memref<2x!tpu.dma_semaphore, #tpu.memory_space<semaphore_mem>> -> memref<1x!tpu.dma_semaphore, #tpu.memory_space<semaphore_mem>>
      %280 = tpu.memref_squeeze %279 : memref<1x!tpu.dma_semaphore, #tpu.memory_space<semaphore_mem>> -> memref<!tpu.dma_semaphore, #tpu.memory_space<semaphore_mem>>
      tpu.enqueue_dma source(%276 : memref<256xf32, #tpu.memory_space<any>>) target(%278 : memref<256xf32, #tpu.memory_space<vmem>>) target_semaphore(%280 : memref<!tpu.dma_semaphore, #tpu.memory_space<semaphore_mem>>)
      %c2_i32_187 = arith.constant 2 : i32
      %281 = arith.muli %arg0, %c2_i32_187 : i32
      %c1_i32_188 = arith.constant 1 : i32
      %282 = arith.addi %281, %c1_i32_188 : i32
      %c8_i32_189 = arith.constant 8 : i32
      %283 = arith.muli %282, %c8_i32_189 : i32
      %c8_i32_190 = arith.constant 8 : i32
      %284 = arith.muli %153, %c8_i32_190 : i32
      %285 = arith.addi %283, %284 : i32
      %c1_i32_191 = arith.constant 1 : i32
      %286 = arith.addi %285, %c1_i32_191 : i32
      %287 = arith.index_cast %286 : i32 to index
      %288 = memref.load %arg2[%287] : memref<16xi32, #tpu.memory_space<smem>>
      %c1_i32_192 = arith.constant 1 : i32
      %c1_i32_193 = arith.constant 1 : i32
      %c0_i32_194 = arith.constant 0 : i32
      %289 = tpu.memref_slice %arg3[%288, %c0_i32_194] : memref<128x256xf32, #tpu.memory_space<any>> -> memref<1x256xf32, #tpu.memory_space<any>>
      %290 = tpu.memref_squeeze %289 : memref<1x256xf32, #tpu.memory_space<any>> -> memref<256xf32, #tpu.memory_space<any>>
      %c0_i32_195 = arith.constant 0 : i32
      %291 = tpu.memref_slice %arg5[%154, %c1_i32_192, %c1_i32_193, %c0_i32_195] : memref<2x8x2x256xf32, #tpu.memory_space<vmem>> -> memref<1x1x1x256xf32, #tpu.memory_space<vmem>>
      %292 = tpu.memref_squeeze %291 : memref<1x1x1x256xf32, #tpu.memory_space<vmem>> -> memref<256xf32, #tpu.memory_space<vmem>>
      %293 = tpu.memref_slice %arg6[%154] : memref<2x!tpu.dma_semaphore, #tpu.memory_space<semaphore_mem>> -> memref<1x!tpu.dma_semaphore, #tpu.memory_space<semaphore_mem>>
      %294 = tpu.memref_squeeze %293 : memref<1x!tpu.dma_semaphore, #tpu.memory_space<semaphore_mem>> -> memref<!tpu.dma_semaphore, #tpu.memory_space<semaphore_mem>>
      tpu.enqueue_dma source(%290 : memref<256xf32, #tpu.memory_space<any>>) target(%292 : memref<256xf32, #tpu.memory_space<vmem>>) target_semaphore(%294 : memref<!tpu.dma_semaphore, #tpu.memory_space<semaphore_mem>>)
      %c2_i32_196 = arith.constant 2 : i32
      %295 = arith.muli %arg0, %c2_i32_196 : i32
      %c1_i32_197 = arith.constant 1 : i32
      %296 = arith.addi %295, %c1_i32_197 : i32
      %c8_i32_198 = arith.constant 8 : i32
      %297 = arith.muli %296, %c8_i32_198 : i32
      %c8_i32_199 = arith.constant 8 : i32
      %298 = arith.muli %153, %c8_i32_199 : i32
      %299 = arith.addi %297, %298 : i32
      %c2_i32_200 = arith.constant 2 : i32
      %300 = arith.addi %299, %c2_i32_200 : i32
      %301 = arith.index_cast %300 : i32 to index
      %302 = memref.load %arg2[%301] : memref<16xi32, #tpu.memory_space<smem>>
      %c2_i32_201 = arith.constant 2 : i32
      %c1_i32_202 = arith.constant 1 : i32
      %c0_i32_203 = arith.constant 0 : i32
      %303 = tpu.memref_slice %arg3[%302, %c0_i32_203] : memref<128x256xf32, #tpu.memory_space<any>> -> memref<1x256xf32, #tpu.memory_space<any>>
      %304 = tpu.memref_squeeze %303 : memref<1x256xf32, #tpu.memory_space<any>> -> memref<256xf32, #tpu.memory_space<any>>
      %c0_i32_204 = arith.constant 0 : i32
      %305 = tpu.memref_slice %arg5[%154, %c2_i32_201, %c1_i32_202, %c0_i32_204] : memref<2x8x2x256xf32, #tpu.memory_space<vmem>> -> memref<1x1x1x256xf32, #tpu.memory_space<vmem>>
      %306 = tpu.memref_squeeze %305 : memref<1x1x1x256xf32, #tpu.memory_space<vmem>> -> memref<256xf32, #tpu.memory_space<vmem>>
      %307 = tpu.memref_slice %arg6[%154] : memref<2x!tpu.dma_semaphore, #tpu.memory_space<semaphore_mem>> -> memref<1x!tpu.dma_semaphore, #tpu.memory_space<semaphore_mem>>
      %308 = tpu.memref_squeeze %307 : memref<1x!tpu.dma_semaphore, #tpu.memory_space<semaphore_mem>> -> memref<!tpu.dma_semaphore, #tpu.memory_space<semaphore_mem>>
      tpu.enqueue_dma source(%304 : memref<256xf32, #tpu.memory_space<any>>) target(%306 : memref<256xf32, #tpu.memory_space<vmem>>) target_semaphore(%308 : memref<!tpu.dma_semaphore, #tpu.memory_space<semaphore_mem>>)
      %c2_i32_205 = arith.constant 2 : i32
      %309 = arith.muli %arg0, %c2_i32_205 : i32
      %c1_i32_206 = arith.constant 1 : i32
      %310 = arith.addi %309, %c1_i32_206 : i32
      %c8_i32_207 = arith.constant 8 : i32
      %311 = arith.muli %310, %c8_i32_207 : i32
      %c8_i32_208 = arith.constant 8 : i32
      %312 = arith.muli %153, %c8_i32_208 : i32
      %313 = arith.addi %311, %312 : i32
      %c3_i32_209 = arith.constant 3 : i32
      %314 = arith.addi %313, %c3_i32_209 : i32
      %315 = arith.index_cast %314 : i32 to index
      %316 = memref.load %arg2[%315] : memref<16xi32, #tpu.memory_space<smem>>
      %c3_i32_210 = arith.constant 3 : i32
      %c1_i32_211 = arith.constant 1 : i32
      %c0_i32_212 = arith.constant 0 : i32
      %317 = tpu.memref_slice %arg3[%316, %c0_i32_212] : memref<128x256xf32, #tpu.memory_space<any>> -> memref<1x256xf32, #tpu.memory_space<any>>
      %318 = tpu.memref_squeeze %317 : memref<1x256xf32, #tpu.memory_space<any>> -> memref<256xf32, #tpu.memory_space<any>>
      %c0_i32_213 = arith.constant 0 : i32
      %319 = tpu.memref_slice %arg5[%154, %c3_i32_210, %c1_i32_211, %c0_i32_213] : memref<2x8x2x256xf32, #tpu.memory_space<vmem>> -> memref<1x1x1x256xf32, #tpu.memory_space<vmem>>
      %320 = tpu.memref_squeeze %319 : memref<1x1x1x256xf32, #tpu.memory_space<vmem>> -> memref<256xf32, #tpu.memory_space<vmem>>
      %321 = tpu.memref_slice %arg6[%154] : memref<2x!tpu.dma_semaphore, #tpu.memory_space<semaphore_mem>> -> memref<1x!tpu.dma_semaphore, #tpu.memory_space<semaphore_mem>>
      %322 = tpu.memref_squeeze %321 : memref<1x!tpu.dma_semaphore, #tpu.memory_space<semaphore_mem>> -> memref<!tpu.dma_semaphore, #tpu.memory_space<semaphore_mem>>
      tpu.enqueue_dma source(%318 : memref<256xf32, #tpu.memory_space<any>>) target(%320 : memref<256xf32, #tpu.memory_space<vmem>>) target_semaphore(%322 : memref<!tpu.dma_semaphore, #tpu.memory_space<semaphore_mem>>)
      %c2_i32_214 = arith.constant 2 : i32
      %323 = arith.muli %arg0, %c2_i32_214 : i32
      %c1_i32_215 = arith.constant 1 : i32
      %324 = arith.addi %323, %c1_i32_215 : i32
      %c8_i32_216 = arith.constant 8 : i32
      %325 = arith.muli %324, %c8_i32_216 : i32
      %c8_i32_217 = arith.constant 8 : i32
      %326 = arith.muli %153, %c8_i32_217 : i32
      %327 = arith.addi %325, %326 : i32
      %c4_i32_218 = arith.constant 4 : i32
      %328 = arith.addi %327, %c4_i32_218 : i32
      %329 = arith.index_cast %328 : i32 to index
      %330 = memref.load %arg2[%329] : memref<16xi32, #tpu.memory_space<smem>>
      %c4_i32_219 = arith.constant 4 : i32
      %c1_i32_220 = arith.constant 1 : i32
      %c0_i32_221 = arith.constant 0 : i32
      %331 = tpu.memref_slice %arg3[%330, %c0_i32_221] : memref<128x256xf32, #tpu.memory_space<any>> -> memref<1x256xf32, #tpu.memory_space<any>>
      %332 = tpu.memref_squeeze %331 : memref<1x256xf32, #tpu.memory_space<any>> -> memref<256xf32, #tpu.memory_space<any>>
      %c0_i32_222 = arith.constant 0 : i32
      %333 = tpu.memref_slice %arg5[%154, %c4_i32_219, %c1_i32_220, %c0_i32_222] : memref<2x8x2x256xf32, #tpu.memory_space<vmem>> -> memref<1x1x1x256xf32, #tpu.memory_space<vmem>>
      %334 = tpu.memref_squeeze %333 : memref<1x1x1x256xf32, #tpu.memory_space<vmem>> -> memref<256xf32, #tpu.memory_space<vmem>>
      %335 = tpu.memref_slice %arg6[%154] : memref<2x!tpu.dma_semaphore, #tpu.memory_space<semaphore_mem>> -> memref<1x!tpu.dma_semaphore, #tpu.memory_space<semaphore_mem>>
      %336 = tpu.memref_squeeze %335 : memref<1x!tpu.dma_semaphore, #tpu.memory_space<semaphore_mem>> -> memref<!tpu.dma_semaphore, #tpu.memory_space<semaphore_mem>>
      tpu.enqueue_dma source(%332 : memref<256xf32, #tpu.memory_space<any>>) target(%334 : memref<256xf32, #tpu.memory_space<vmem>>) target_semaphore(%336 : memref<!tpu.dma_semaphore, #tpu.memory_space<semaphore_mem>>)
      %c2_i32_223 = arith.constant 2 : i32
      %337 = arith.muli %arg0, %c2_i32_223 : i32
      %c1_i32_224 = arith.constant 1 : i32
      %338 = arith.addi %337, %c1_i32_224 : i32
      %c8_i32_225 = arith.constant 8 : i32
      %339 = arith.muli %338, %c8_i32_225 : i32
      %c8_i32_226 = arith.constant 8 : i32
      %340 = arith.muli %153, %c8_i32_226 : i32
      %341 = arith.addi %339, %340 : i32
      %c5_i32_227 = arith.constant 5 : i32
      %342 = arith.addi %341, %c5_i32_227 : i32
      %343 = arith.index_cast %342 : i32 to index
      %344 = memref.load %arg2[%343] : memref<16xi32, #tpu.memory_space<smem>>
      %c5_i32_228 = arith.constant 5 : i32
      %c1_i32_229 = arith.constant 1 : i32
      %c0_i32_230 = arith.constant 0 : i32
      %345 = tpu.memref_slice %arg3[%344, %c0_i32_230] : memref<128x256xf32, #tpu.memory_space<any>> -> memref<1x256xf32, #tpu.memory_space<any>>
      %346 = tpu.memref_squeeze %345 : memref<1x256xf32, #tpu.memory_space<any>> -> memref<256xf32, #tpu.memory_space<any>>
      %c0_i32_231 = arith.constant 0 : i32
      %347 = tpu.memref_slice %arg5[%154, %c5_i32_228, %c1_i32_229, %c0_i32_231] : memref<2x8x2x256xf32, #tpu.memory_space<vmem>> -> memref<1x1x1x256xf32, #tpu.memory_space<vmem>>
      %348 = tpu.memref_squeeze %347 : memref<1x1x1x256xf32, #tpu.memory_space<vmem>> -> memref<256xf32, #tpu.memory_space<vmem>>
      %349 = tpu.memref_slice %arg6[%154] : memref<2x!tpu.dma_semaphore, #tpu.memory_space<semaphore_mem>> -> memref<1x!tpu.dma_semaphore, #tpu.memory_space<semaphore_mem>>
      %350 = tpu.memref_squeeze %349 : memref<1x!tpu.dma_semaphore, #tpu.memory_space<semaphore_mem>> -> memref<!tpu.dma_semaphore, #tpu.memory_space<semaphore_mem>>
      tpu.enqueue_dma source(%346 : memref<256xf32, #tpu.memory_space<any>>) target(%348 : memref<256xf32, #tpu.memory_space<vmem>>) target_semaphore(%350 : memref<!tpu.dma_semaphore, #tpu.memory_space<semaphore_mem>>)
      %c2_i32_232 = arith.constant 2 : i32
      %351 = arith.muli %arg0, %c2_i32_232 : i32
      %c1_i32_233 = arith.constant 1 : i32
      %352 = arith.addi %351, %c1_i32_233 : i32
      %c8_i32_234 = arith.constant 8 : i32
      %353 = arith.muli %352, %c8_i32_234 : i32
      %c8_i32_235 = arith.constant 8 : i32
      %354 = arith.muli %153, %c8_i32_235 : i32
      %355 = arith.addi %353, %354 : i32
      %c6_i32_236 = arith.constant 6 : i32
      %356 = arith.addi %355, %c6_i32_236 : i32
      %357 = arith.index_cast %356 : i32 to index
      %358 = memref.load %arg2[%357] : memref<16xi32, #tpu.memory_space<smem>>
      %c6_i32_237 = arith.constant 6 : i32
      %c1_i32_238 = arith.constant 1 : i32
      %c0_i32_239 = arith.constant 0 : i32
      %359 = tpu.memref_slice %arg3[%358, %c0_i32_239] : memref<128x256xf32, #tpu.memory_space<any>> -> memref<1x256xf32, #tpu.memory_space<any>>
      %360 = tpu.memref_squeeze %359 : memref<1x256xf32, #tpu.memory_space<any>> -> memref<256xf32, #tpu.memory_space<any>>
      %c0_i32_240 = arith.constant 0 : i32
      %361 = tpu.memref_slice %arg5[%154, %c6_i32_237, %c1_i32_238, %c0_i32_240] : memref<2x8x2x256xf32, #tpu.memory_space<vmem>> -> memref<1x1x1x256xf32, #tpu.memory_space<vmem>>
      %362 = tpu.memref_squeeze %361 : memref<1x1x1x256xf32, #tpu.memory_space<vmem>> -> memref<256xf32, #tpu.memory_space<vmem>>
      %363 = tpu.memref_slice %arg6[%154] : memref<2x!tpu.dma_semaphore, #tpu.memory_space<semaphore_mem>> -> memref<1x!tpu.dma_semaphore, #tpu.memory_space<semaphore_mem>>
      %364 = tpu.memref_squeeze %363 : memref<1x!tpu.dma_semaphore, #tpu.memory_space<semaphore_mem>> -> memref<!tpu.dma_semaphore, #tpu.memory_space<semaphore_mem>>
      tpu.enqueue_dma source(%360 : memref<256xf32, #tpu.memory_space<any>>) target(%362 : memref<256xf32, #tpu.memory_space<vmem>>) target_semaphore(%364 : memref<!tpu.dma_semaphore, #tpu.memory_space<semaphore_mem>>)
      %c2_i32_241 = arith.constant 2 : i32
      %365 = arith.muli %arg0, %c2_i32_241 : i32
      %c1_i32_242 = arith.constant 1 : i32
      %366 = arith.addi %365, %c1_i32_242 : i32
      %c8_i32_243 = arith.constant 8 : i32
      %367 = arith.muli %366, %c8_i32_243 : i32
      %c8_i32_244 = arith.constant 8 : i32
      %368 = arith.muli %153, %c8_i32_244 : i32
      %369 = arith.addi %367, %368 : i32
      %c7_i32_245 = arith.constant 7 : i32
      %370 = arith.addi %369, %c7_i32_245 : i32
      %371 = arith.index_cast %370 : i32 to index
      %372 = memref.load %arg2[%371] : memref<16xi32, #tpu.memory_space<smem>>
      %c7_i32_246 = arith.constant 7 : i32
      %c1_i32_247 = arith.constant 1 : i32
      %c0_i32_248 = arith.constant 0 : i32
      %373 = tpu.memref_slice %arg3[%372, %c0_i32_248] : memref<128x256xf32, #tpu.memory_space<any>> -> memref<1x256xf32, #tpu.memory_space<any>>
      %374 = tpu.memref_squeeze %373 : memref<1x256xf32, #tpu.memory_space<any>> -> memref<256xf32, #tpu.memory_space<any>>
      %c0_i32_249 = arith.constant 0 : i32
      %375 = tpu.memref_slice %arg5[%154, %c7_i32_246, %c1_i32_247, %c0_i32_249] : memref<2x8x2x256xf32, #tpu.memory_space<vmem>> -> memref<1x1x1x256xf32, #tpu.memory_space<vmem>>
      %376 = tpu.memref_squeeze %375 : memref<1x1x1x256xf32, #tpu.memory_space<vmem>> -> memref<256xf32, #tpu.memory_space<vmem>>
      %377 = tpu.memref_slice %arg6[%154] : memref<2x!tpu.dma_semaphore, #tpu.memory_space<semaphore_mem>> -> memref<1x!tpu.dma_semaphore, #tpu.memory_space<semaphore_mem>>
      %378 = tpu.memref_squeeze %377 : memref<1x!tpu.dma_semaphore, #tpu.memory_space<semaphore_mem>> -> memref<!tpu.dma_semaphore, #tpu.memory_space<semaphore_mem>>
      tpu.enqueue_dma source(%374 : memref<256xf32, #tpu.memory_space<any>>) target(%376 : memref<256xf32, #tpu.memory_space<vmem>>) target_semaphore(%378 : memref<!tpu.dma_semaphore, #tpu.memory_space<semaphore_mem>>)
    } else {
    }
    %c0_i32_8 = arith.constant 0 : i32
    %c0_i32_9 = arith.constant 0 : i32
    %c0_i32_10 = arith.constant 0 : i32
    %c0_i32_11 = arith.constant 0 : i32
    %17 = tpu.memref_slice %arg3[%c0_i32_8, %c0_i32_11] : memref<128x256xf32, #tpu.memory_space<any>> -> memref<1x256xf32, #tpu.memory_space<any>>
    %18 = tpu.memref_squeeze %17 : memref<1x256xf32, #tpu.memory_space<any>> -> memref<256xf32, #tpu.memory_space<any>>
    %c0_i32_12 = arith.constant 0 : i32
    %19 = tpu.memref_slice %arg5[%9, %c0_i32_9, %c0_i32_10, %c0_i32_12] : memref<2x8x2x256xf32, #tpu.memory_space<vmem>> -> memref<1x1x1x256xf32, #tpu.memory_space<vmem>>
    %20 = tpu.memref_squeeze %19 : memref<1x1x1x256xf32, #tpu.memory_space<vmem>> -> memref<256xf32, #tpu.memory_space<vmem>>
    %21 = tpu.memref_slice %arg6[%9] : memref<2x!tpu.dma_semaphore, #tpu.memory_space<semaphore_mem>> -> memref<1x!tpu.dma_semaphore, #tpu.memory_space<semaphore_mem>>
    %22 = tpu.memref_squeeze %21 : memref<1x!tpu.dma_semaphore, #tpu.memory_space<semaphore_mem>> -> memref<!tpu.dma_semaphore, #tpu.memory_space<semaphore_mem>>
    tpu.wait_dma2 semaphore(%22 : memref<!tpu.dma_semaphore, #tpu.memory_space<semaphore_mem>>) src(%18 : memref<256xf32, #tpu.memory_space<any>>) dst(%20 : memref<256xf32, #tpu.memory_space<vmem>>)
    %c0_i32_13 = arith.constant 0 : i32
    %c0_i32_14 = arith.constant 0 : i32
    %c0_i32_15 = arith.constant 0 : i32
    %c0_i32_16 = arith.constant 0 : i32
    %23 = tpu.memref_slice %arg3[%c0_i32_13, %c0_i32_16] : memref<128x256xf32, #tpu.memory_space<any>> -> memref<1x256xf32, #tpu.memory_space<any>>
    %24 = tpu.memref_squeeze %23 : memref<1x256xf32, #tpu.memory_space<any>> -> memref<256xf32, #tpu.memory_space<any>>
    %c0_i32_17 = arith.constant 0 : i32
    %25 = tpu.memref_slice %arg5[%9, %c0_i32_14, %c0_i32_15, %c0_i32_17] : memref<2x8x2x256xf32, #tpu.memory_space<vmem>> -> memref<1x1x1x256xf32, #tpu.memory_space<vmem>>
    %26 = tpu.memref_squeeze %25 : memref<1x1x1x256xf32, #tpu.memory_space<vmem>> -> memref<256xf32, #tpu.memory_space<vmem>>
    %27 = tpu.memref_slice %arg6[%9] : memref<2x!tpu.dma_semaphore, #tpu.memory_space<semaphore_mem>> -> memref<1x!tpu.dma_semaphore, #tpu.memory_space<semaphore_mem>>
    %28 = tpu.memref_squeeze %27 : memref<1x!tpu.dma_semaphore, #tpu.memory_space<semaphore_mem>> -> memref<!tpu.dma_semaphore, #tpu.memory_space<semaphore_mem>>
    tpu.wait_dma2 semaphore(%28 : memref<!tpu.dma_semaphore, #tpu.memory_space<semaphore_mem>>) src(%24 : memref<256xf32, #tpu.memory_space<any>>) dst(%26 : memref<256xf32, #tpu.memory_space<vmem>>)
    %c0_i32_18 = arith.constant 0 : i32
    %c0_i32_19 = arith.constant 0 : i32
    %c0_i32_20 = arith.constant 0 : i32
    %c0_i32_21 = arith.constant 0 : i32
    %29 = tpu.memref_slice %arg3[%c0_i32_18, %c0_i32_21] : memref<128x256xf32, #tpu.memory_space<any>> -> memref<1x256xf32, #tpu.memory_space<any>>
    %30 = tpu.memref_squeeze %29 : memref<1x256xf32, #tpu.memory_space<any>> -> memref<256xf32, #tpu.memory_space<any>>
    %c0_i32_22 = arith.constant 0 : i32
    %31 = tpu.memref_slice %arg5[%9, %c0_i32_19, %c0_i32_20, %c0_i32_22] : memref<2x8x2x256xf32, #tpu.memory_space<vmem>> -> memref<1x1x1x256xf32, #tpu.memory_space<vmem>>
    %32 = tpu.memref_squeeze %31 : memref<1x1x1x256xf32, #tpu.memory_space<vmem>> -> memref<256xf32, #tpu.memory_space<vmem>>
    %33 = tpu.memref_slice %arg6[%9] : memref<2x!tpu.dma_semaphore, #tpu.memory_space<semaphore_mem>> -> memref<1x!tpu.dma_semaphore, #tpu.memory_space<semaphore_mem>>
    %34 = tpu.memref_squeeze %33 : memref<1x!tpu.dma_semaphore, #tpu.memory_space<semaphore_mem>> -> memref<!tpu.dma_semaphore, #tpu.memory_space<semaphore_mem>>
    tpu.wait_dma2 semaphore(%34 : memref<!tpu.dma_semaphore, #tpu.memory_space<semaphore_mem>>) src(%30 : memref<256xf32, #tpu.memory_space<any>>) dst(%32 : memref<256xf32, #tpu.memory_space<vmem>>)
    %c0_i32_23 = arith.constant 0 : i32
    %c0_i32_24 = arith.constant 0 : i32
    %c0_i32_25 = arith.constant 0 : i32
    %c0_i32_26 = arith.constant 0 : i32
    %35 = tpu.memref_slice %arg3[%c0_i32_23, %c0_i32_26] : memref<128x256xf32, #tpu.memory_space<any>> -> memref<1x256xf32, #tpu.memory_space<any>>
    %36 = tpu.memref_squeeze %35 : memref<1x256xf32, #tpu.memory_space<any>> -> memref<256xf32, #tpu.memory_space<any>>
    %c0_i32_27 = arith.constant 0 : i32
    %37 = tpu.memref_slice %arg5[%9, %c0_i32_24, %c0_i32_25, %c0_i32_27] : memref<2x8x2x256xf32, #tpu.memory_space<vmem>> -> memref<1x1x1x256xf32, #tpu.memory_space<vmem>>
    %38 = tpu.memref_squeeze %37 : memref<1x1x1x256xf32, #tpu.memory_space<vmem>> -> memref<256xf32, #tpu.memory_space<vmem>>
    %39 = tpu.memref_slice %arg6[%9] : memref<2x!tpu.dma_semaphore, #tpu.memory_space<semaphore_mem>> -> memref<1x!tpu.dma_semaphore, #tpu.memory_space<semaphore_mem>>
    %40 = tpu.memref_squeeze %39 : memref<1x!tpu.dma_semaphore, #tpu.memory_space<semaphore_mem>> -> memref<!tpu.dma_semaphore, #tpu.memory_space<semaphore_mem>>
    tpu.wait_dma2 semaphore(%40 : memref<!tpu.dma_semaphore, #tpu.memory_space<semaphore_mem>>) src(%36 : memref<256xf32, #tpu.memory_space<any>>) dst(%38 : memref<256xf32, #tpu.memory_space<vmem>>)
    %c0_i32_28 = arith.constant 0 : i32
    %c0_i32_29 = arith.constant 0 : i32
    %c0_i32_30 = arith.constant 0 : i32
    %c0_i32_31 = arith.constant 0 : i32
    %41 = tpu.memref_slice %arg3[%c0_i32_28, %c0_i32_31] : memref<128x256xf32, #tpu.memory_space<any>> -> memref<1x256xf32, #tpu.memory_space<any>>
    %42 = tpu.memref_squeeze %41 : memref<1x256xf32, #tpu.memory_space<any>> -> memref<256xf32, #tpu.memory_space<any>>
    %c0_i32_32 = arith.constant 0 : i32
    %43 = tpu.memref_slice %arg5[%9, %c0_i32_29, %c0_i32_30, %c0_i32_32] : memref<2x8x2x256xf32, #tpu.memory_space<vmem>> -> memref<1x1x1x256xf32, #tpu.memory_space<vmem>>
    %44 = tpu.memref_squeeze %43 : memref<1x1x1x256xf32, #tpu.memory_space<vmem>> -> memref<256xf32, #tpu.memory_space<vmem>>
    %45 = tpu.memref_slice %arg6[%9] : memref<2x!tpu.dma_semaphore, #tpu.memory_space<semaphore_mem>> -> memref<1x!tpu.dma_semaphore, #tpu.memory_space<semaphore_mem>>
    %46 = tpu.memref_squeeze %45 : memref<1x!tpu.dma_semaphore, #tpu.memory_space<semaphore_mem>> -> memref<!tpu.dma_semaphore, #tpu.memory_space<semaphore_mem>>
    tpu.wait_dma2 semaphore(%46 : memref<!tpu.dma_semaphore, #tpu.memory_space<semaphore_mem>>) src(%42 : memref<256xf32, #tpu.memory_space<any>>) dst(%44 : memref<256xf32, #tpu.memory_space<vmem>>)
    %c0_i32_33 = arith.constant 0 : i32
    %c0_i32_34 = arith.constant 0 : i32
    %c0_i32_35 = arith.constant 0 : i32
    %c0_i32_36 = arith.constant 0 : i32
    %47 = tpu.memref_slice %arg3[%c0_i32_33, %c0_i32_36] : memref<128x256xf32, #tpu.memory_space<any>> -> memref<1x256xf32, #tpu.memory_space<any>>
    %48 = tpu.memref_squeeze %47 : memref<1x256xf32, #tpu.memory_space<any>> -> memref<256xf32, #tpu.memory_space<any>>
    %c0_i32_37 = arith.constant 0 : i32
    %49 = tpu.memref_slice %arg5[%9, %c0_i32_34, %c0_i32_35, %c0_i32_37] : memref<2x8x2x256xf32, #tpu.memory_space<vmem>> -> memref<1x1x1x256xf32, #tpu.memory_space<vmem>>
    %50 = tpu.memref_squeeze %49 : memref<1x1x1x256xf32, #tpu.memory_space<vmem>> -> memref<256xf32, #tpu.memory_space<vmem>>
    %51 = tpu.memref_slice %arg6[%9] : memref<2x!tpu.dma_semaphore, #tpu.memory_space<semaphore_mem>> -> memref<1x!tpu.dma_semaphore, #tpu.memory_space<semaphore_mem>>
    %52 = tpu.memref_squeeze %51 : memref<1x!tpu.dma_semaphore, #tpu.memory_space<semaphore_mem>> -> memref<!tpu.dma_semaphore, #tpu.memory_space<semaphore_mem>>
    tpu.wait_dma2 semaphore(%52 : memref<!tpu.dma_semaphore, #tpu.memory_space<semaphore_mem>>) src(%48 : memref<256xf32, #tpu.memory_space<any>>) dst(%50 : memref<256xf32, #tpu.memory_space<vmem>>)
    %c0_i32_38 = arith.constant 0 : i32
    %c0_i32_39 = arith.constant 0 : i32
    %c0_i32_40 = arith.constant 0 : i32
    %c0_i32_41 = arith.constant 0 : i32
    %53 = tpu.memref_slice %arg3[%c0_i32_38, %c0_i32_41] : memref<128x256xf32, #tpu.memory_space<any>> -> memref<1x256xf32, #tpu.memory_space<any>>
    %54 = tpu.memref_squeeze %53 : memref<1x256xf32, #tpu.memory_space<any>> -> memref<256xf32, #tpu.memory_space<any>>
    %c0_i32_42 = arith.constant 0 : i32
    %55 = tpu.memref_slice %arg5[%9, %c0_i32_39, %c0_i32_40, %c0_i32_42] : memref<2x8x2x256xf32, #tpu.memory_space<vmem>> -> memref<1x1x1x256xf32, #tpu.memory_space<vmem>>
    %56 = tpu.memref_squeeze %55 : memref<1x1x1x256xf32, #tpu.memory_space<vmem>> -> memref<256xf32, #tpu.memory_space<vmem>>
    %57 = tpu.memref_slice %arg6[%9] : memref<2x!tpu.dma_semaphore, #tpu.memory_space<semaphore_mem>> -> memref<1x!tpu.dma_semaphore, #tpu.memory_space<semaphore_mem>>
    %58 = tpu.memref_squeeze %57 : memref<1x!tpu.dma_semaphore, #tpu.memory_space<semaphore_mem>> -> memref<!tpu.dma_semaphore, #tpu.memory_space<semaphore_mem>>
    tpu.wait_dma2 semaphore(%58 : memref<!tpu.dma_semaphore, #tpu.memory_space<semaphore_mem>>) src(%54 : memref<256xf32, #tpu.memory_space<any>>) dst(%56 : memref<256xf32, #tpu.memory_space<vmem>>)
    %c0_i32_43 = arith.constant 0 : i32
    %c0_i32_44 = arith.constant 0 : i32
    %c0_i32_45 = arith.constant 0 : i32
    %c0_i32_46 = arith.constant 0 : i32
    %59 = tpu.memref_slice %arg3[%c0_i32_43, %c0_i32_46] : memref<128x256xf32, #tpu.memory_space<any>> -> memref<1x256xf32, #tpu.memory_space<any>>
    %60 = tpu.memref_squeeze %59 : memref<1x256xf32, #tpu.memory_space<any>> -> memref<256xf32, #tpu.memory_space<any>>
    %c0_i32_47 = arith.constant 0 : i32
    %61 = tpu.memref_slice %arg5[%9, %c0_i32_44, %c0_i32_45, %c0_i32_47] : memref<2x8x2x256xf32, #tpu.memory_space<vmem>> -> memref<1x1x1x256xf32, #tpu.memory_space<vmem>>
    %62 = tpu.memref_squeeze %61 : memref<1x1x1x256xf32, #tpu.memory_space<vmem>> -> memref<256xf32, #tpu.memory_space<vmem>>
    %63 = tpu.memref_slice %arg6[%9] : memref<2x!tpu.dma_semaphore, #tpu.memory_space<semaphore_mem>> -> memref<1x!tpu.dma_semaphore, #tpu.memory_space<semaphore_mem>>
    %64 = tpu.memref_squeeze %63 : memref<1x!tpu.dma_semaphore, #tpu.memory_space<semaphore_mem>> -> memref<!tpu.dma_semaphore, #tpu.memory_space<semaphore_mem>>
    tpu.wait_dma2 semaphore(%64 : memref<!tpu.dma_semaphore, #tpu.memory_space<semaphore_mem>>) src(%60 : memref<256xf32, #tpu.memory_space<any>>) dst(%62 : memref<256xf32, #tpu.memory_space<vmem>>)
    %c0_i32_48 = arith.constant 0 : i32
    %c0_i32_49 = arith.constant 0 : i32
    %c0_i32_50 = arith.constant 0 : i32
    %c0_i32_51 = arith.constant 0 : i32
    %65 = tpu.memref_slice %arg3[%c0_i32_48, %c0_i32_51] : memref<128x256xf32, #tpu.memory_space<any>> -> memref<1x256xf32, #tpu.memory_space<any>>
    %66 = tpu.memref_squeeze %65 : memref<1x256xf32, #tpu.memory_space<any>> -> memref<256xf32, #tpu.memory_space<any>>
    %c0_i32_52 = arith.constant 0 : i32
    %67 = tpu.memref_slice %arg5[%9, %c0_i32_49, %c0_i32_50, %c0_i32_52] : memref<2x8x2x256xf32, #tpu.memory_space<vmem>> -> memref<1x1x1x256xf32, #tpu.memory_space<vmem>>
    %68 = tpu.memref_squeeze %67 : memref<1x1x1x256xf32, #tpu.memory_space<vmem>> -> memref<256xf32, #tpu.memory_space<vmem>>
    %69 = tpu.memref_slice %arg6[%9] : memref<2x!tpu.dma_semaphore, #tpu.memory_space<semaphore_mem>> -> memref<1x!tpu.dma_semaphore, #tpu.memory_space<semaphore_mem>>
    %70 = tpu.memref_squeeze %69 : memref<1x!tpu.dma_semaphore, #tpu.memory_space<semaphore_mem>> -> memref<!tpu.dma_semaphore, #tpu.memory_space<semaphore_mem>>
    tpu.wait_dma2 semaphore(%70 : memref<!tpu.dma_semaphore, #tpu.memory_space<semaphore_mem>>) src(%66 : memref<256xf32, #tpu.memory_space<any>>) dst(%68 : memref<256xf32, #tpu.memory_space<vmem>>)
    %c0_i32_53 = arith.constant 0 : i32
    %c0_i32_54 = arith.constant 0 : i32
    %c0_i32_55 = arith.constant 0 : i32
    %c0_i32_56 = arith.constant 0 : i32
    %71 = tpu.memref_slice %arg3[%c0_i32_53, %c0_i32_56] : memref<128x256xf32, #tpu.memory_space<any>> -> memref<1x256xf32, #tpu.memory_space<any>>
    %72 = tpu.memref_squeeze %71 : memref<1x256xf32, #tpu.memory_space<any>> -> memref<256xf32, #tpu.memory_space<any>>
    %c0_i32_57 = arith.constant 0 : i32
    %73 = tpu.memref_slice %arg5[%9, %c0_i32_54, %c0_i32_55, %c0_i32_57] : memref<2x8x2x256xf32, #tpu.memory_space<vmem>> -> memref<1x1x1x256xf32, #tpu.memory_space<vmem>>
    %74 = tpu.memref_squeeze %73 : memref<1x1x1x256xf32, #tpu.memory_space<vmem>> -> memref<256xf32, #tpu.memory_space<vmem>>
    %75 = tpu.memref_slice %arg6[%9] : memref<2x!tpu.dma_semaphore, #tpu.memory_space<semaphore_mem>> -> memref<1x!tpu.dma_semaphore, #tpu.memory_space<semaphore_mem>>
    %76 = tpu.memref_squeeze %75 : memref<1x!tpu.dma_semaphore, #tpu.memory_space<semaphore_mem>> -> memref<!tpu.dma_semaphore, #tpu.memory_space<semaphore_mem>>
    tpu.wait_dma2 semaphore(%76 : memref<!tpu.dma_semaphore, #tpu.memory_space<semaphore_mem>>) src(%72 : memref<256xf32, #tpu.memory_space<any>>) dst(%74 : memref<256xf32, #tpu.memory_space<vmem>>)
    %c0_i32_58 = arith.constant 0 : i32
    %c0_i32_59 = arith.constant 0 : i32
    %c0_i32_60 = arith.constant 0 : i32
    %c0_i32_61 = arith.constant 0 : i32
    %77 = tpu.memref_slice %arg3[%c0_i32_58, %c0_i32_61] : memref<128x256xf32, #tpu.memory_space<any>> -> memref<1x256xf32, #tpu.memory_space<any>>
    %78 = tpu.memref_squeeze %77 : memref<1x256xf32, #tpu.memory_space<any>> -> memref<256xf32, #tpu.memory_space<any>>
    %c0_i32_62 = arith.constant 0 : i32
    %79 = tpu.memref_slice %arg5[%9, %c0_i32_59, %c0_i32_60, %c0_i32_62] : memref<2x8x2x256xf32, #tpu.memory_space<vmem>> -> memref<1x1x1x256xf32, #tpu.memory_space<vmem>>
    %80 = tpu.memref_squeeze %79 : memref<1x1x1x256xf32, #tpu.memory_space<vmem>> -> memref<256xf32, #tpu.memory_space<vmem>>
    %81 = tpu.memref_slice %arg6[%9] : memref<2x!tpu.dma_semaphore, #tpu.memory_space<semaphore_mem>> -> memref<1x!tpu.dma_semaphore, #tpu.memory_space<semaphore_mem>>
    %82 = tpu.memref_squeeze %81 : memref<1x!tpu.dma_semaphore, #tpu.memory_space<semaphore_mem>> -> memref<!tpu.dma_semaphore, #tpu.memory_space<semaphore_mem>>
    tpu.wait_dma2 semaphore(%82 : memref<!tpu.dma_semaphore, #tpu.memory_space<semaphore_mem>>) src(%78 : memref<256xf32, #tpu.memory_space<any>>) dst(%80 : memref<256xf32, #tpu.memory_space<vmem>>)
    %c0_i32_63 = arith.constant 0 : i32
    %c0_i32_64 = arith.constant 0 : i32
    %c0_i32_65 = arith.constant 0 : i32
    %c0_i32_66 = arith.constant 0 : i32
    %83 = tpu.memref_slice %arg3[%c0_i32_63, %c0_i32_66] : memref<128x256xf32, #tpu.memory_space<any>> -> memref<1x256xf32, #tpu.memory_space<any>>
    %84 = tpu.memref_squeeze %83 : memref<1x256xf32, #tpu.memory_space<any>> -> memref<256xf32, #tpu.memory_space<any>>
    %c0_i32_67 = arith.constant 0 : i32
    %85 = tpu.memref_slice %arg5[%9, %c0_i32_64, %c0_i32_65, %c0_i32_67] : memref<2x8x2x256xf32, #tpu.memory_space<vmem>> -> memref<1x1x1x256xf32, #tpu.memory_space<vmem>>
    %86 = tpu.memref_squeeze %85 : memref<1x1x1x256xf32, #tpu.memory_space<vmem>> -> memref<256xf32, #tpu.memory_space<vmem>>
    %87 = tpu.memref_slice %arg6[%9] : memref<2x!tpu.dma_semaphore, #tpu.memory_space<semaphore_mem>> -> memref<1x!tpu.dma_semaphore, #tpu.memory_space<semaphore_mem>>
    %88 = tpu.memref_squeeze %87 : memref<1x!tpu.dma_semaphore, #tpu.memory_space<semaphore_mem>> -> memref<!tpu.dma_semaphore, #tpu.memory_space<semaphore_mem>>
    tpu.wait_dma2 semaphore(%88 : memref<!tpu.dma_semaphore, #tpu.memory_space<semaphore_mem>>) src(%84 : memref<256xf32, #tpu.memory_space<any>>) dst(%86 : memref<256xf32, #tpu.memory_space<vmem>>)
    %c0_i32_68 = arith.constant 0 : i32
    %c0_i32_69 = arith.constant 0 : i32
    %c0_i32_70 = arith.constant 0 : i32
    %c0_i32_71 = arith.constant 0 : i32
    %89 = tpu.memref_slice %arg3[%c0_i32_68, %c0_i32_71] : memref<128x256xf32, #tpu.memory_space<any>> -> memref<1x256xf32, #tpu.memory_space<any>>
    %90 = tpu.memref_squeeze %89 : memref<1x256xf32, #tpu.memory_space<any>> -> memref<256xf32, #tpu.memory_space<any>>
    %c0_i32_72 = arith.constant 0 : i32
    %91 = tpu.memref_slice %arg5[%9, %c0_i32_69, %c0_i32_70, %c0_i32_72] : memref<2x8x2x256xf32, #tpu.memory_space<vmem>> -> memref<1x1x1x256xf32, #tpu.memory_space<vmem>>
    %92 = tpu.memref_squeeze %91 : memref<1x1x1x256xf32, #tpu.memory_space<vmem>> -> memref<256xf32, #tpu.memory_space<vmem>>
    %93 = tpu.memref_slice %arg6[%9] : memref<2x!tpu.dma_semaphore, #tpu.memory_space<semaphore_mem>> -> memref<1x!tpu.dma_semaphore, #tpu.memory_space<semaphore_mem>>
    %94 = tpu.memref_squeeze %93 : memref<1x!tpu.dma_semaphore, #tpu.memory_space<semaphore_mem>> -> memref<!tpu.dma_semaphore, #tpu.memory_space<semaphore_mem>>
    tpu.wait_dma2 semaphore(%94 : memref<!tpu.dma_semaphore, #tpu.memory_space<semaphore_mem>>) src(%90 : memref<256xf32, #tpu.memory_space<any>>) dst(%92 : memref<256xf32, #tpu.memory_space<vmem>>)
    %c0_i32_73 = arith.constant 0 : i32
    %c0_i32_74 = arith.constant 0 : i32
    %c0_i32_75 = arith.constant 0 : i32
    %c0_i32_76 = arith.constant 0 : i32
    %95 = tpu.memref_slice %arg3[%c0_i32_73, %c0_i32_76] : memref<128x256xf32, #tpu.memory_space<any>> -> memref<1x256xf32, #tpu.memory_space<any>>
    %96 = tpu.memref_squeeze %95 : memref<1x256xf32, #tpu.memory_space<any>> -> memref<256xf32, #tpu.memory_space<any>>
    %c0_i32_77 = arith.constant 0 : i32
    %97 = tpu.memref_slice %arg5[%9, %c0_i32_74, %c0_i32_75, %c0_i32_77] : memref<2x8x2x256xf32, #tpu.memory_space<vmem>> -> memref<1x1x1x256xf32, #tpu.memory_space<vmem>>
    %98 = tpu.memref_squeeze %97 : memref<1x1x1x256xf32, #tpu.memory_space<vmem>> -> memref<256xf32, #tpu.memory_space<vmem>>
    %99 = tpu.memref_slice %arg6[%9] : memref<2x!tpu.dma_semaphore, #tpu.memory_space<semaphore_mem>> -> memref<1x!tpu.dma_semaphore, #tpu.memory_space<semaphore_mem>>
    %100 = tpu.memref_squeeze %99 : memref<1x!tpu.dma_semaphore, #tpu.memory_space<semaphore_mem>> -> memref<!tpu.dma_semaphore, #tpu.memory_space<semaphore_mem>>
    tpu.wait_dma2 semaphore(%100 : memref<!tpu.dma_semaphore, #tpu.memory_space<semaphore_mem>>) src(%96 : memref<256xf32, #tpu.memory_space<any>>) dst(%98 : memref<256xf32, #tpu.memory_space<vmem>>)
    %c0_i32_78 = arith.constant 0 : i32
    %c0_i32_79 = arith.constant 0 : i32
    %c0_i32_80 = arith.constant 0 : i32
    %c0_i32_81 = arith.constant 0 : i32
    %101 = tpu.memref_slice %arg3[%c0_i32_78, %c0_i32_81] : memref<128x256xf32, #tpu.memory_space<any>> -> memref<1x256xf32, #tpu.memory_space<any>>
    %102 = tpu.memref_squeeze %101 : memref<1x256xf32, #tpu.memory_space<any>> -> memref<256xf32, #tpu.memory_space<any>>
    %c0_i32_82 = arith.constant 0 : i32
    %103 = tpu.memref_slice %arg5[%9, %c0_i32_79, %c0_i32_80, %c0_i32_82] : memref<2x8x2x256xf32, #tpu.memory_space<vmem>> -> memref<1x1x1x256xf32, #tpu.memory_space<vmem>>
    %104 = tpu.memref_squeeze %103 : memref<1x1x1x256xf32, #tpu.memory_space<vmem>> -> memref<256xf32, #tpu.memory_space<vmem>>
    %105 = tpu.memref_slice %arg6[%9] : memref<2x!tpu.dma_semaphore, #tpu.memory_space<semaphore_mem>> -> memref<1x!tpu.dma_semaphore, #tpu.memory_space<semaphore_mem>>
    %106 = tpu.memref_squeeze %105 : memref<1x!tpu.dma_semaphore, #tpu.memory_space<semaphore_mem>> -> memref<!tpu.dma_semaphore, #tpu.memory_space<semaphore_mem>>
    tpu.wait_dma2 semaphore(%106 : memref<!tpu.dma_semaphore, #tpu.memory_space<semaphore_mem>>) src(%102 : memref<256xf32, #tpu.memory_space<any>>) dst(%104 : memref<256xf32, #tpu.memory_space<vmem>>)
    %c0_i32_83 = arith.constant 0 : i32
    %c0_i32_84 = arith.constant 0 : i32
    %c0_i32_85 = arith.constant 0 : i32
    %c0_i32_86 = arith.constant 0 : i32
    %107 = tpu.memref_slice %arg3[%c0_i32_83, %c0_i32_86] : memref<128x256xf32, #tpu.memory_space<any>> -> memref<1x256xf32, #tpu.memory_space<any>>
    %108 = tpu.memref_squeeze %107 : memref<1x256xf32, #tpu.memory_space<any>> -> memref<256xf32, #tpu.memory_space<any>>
    %c0_i32_87 = arith.constant 0 : i32
    %109 = tpu.memref_slice %arg5[%9, %c0_i32_84, %c0_i32_85, %c0_i32_87] : memref<2x8x2x256xf32, #tpu.memory_space<vmem>> -> memref<1x1x1x256xf32, #tpu.memory_space<vmem>>
    %110 = tpu.memref_squeeze %109 : memref<1x1x1x256xf32, #tpu.memory_space<vmem>> -> memref<256xf32, #tpu.memory_space<vmem>>
    %111 = tpu.memref_slice %arg6[%9] : memref<2x!tpu.dma_semaphore, #tpu.memory_space<semaphore_mem>> -> memref<1x!tpu.dma_semaphore, #tpu.memory_space<semaphore_mem>>
    %112 = tpu.memref_squeeze %111 : memref<1x!tpu.dma_semaphore, #tpu.memory_space<semaphore_mem>> -> memref<!tpu.dma_semaphore, #tpu.memory_space<semaphore_mem>>
    tpu.wait_dma2 semaphore(%112 : memref<!tpu.dma_semaphore, #tpu.memory_space<semaphore_mem>>) src(%108 : memref<256xf32, #tpu.memory_space<any>>) dst(%110 : memref<256xf32, #tpu.memory_space<vmem>>)
    %113 = arith.index_cast %9 : i32 to index
    %c0 = arith.constant 0 : index
    %c0_88 = arith.constant 0 : index
    %c0_89 = arith.constant 0 : index
    %114 = vector.load %arg5[%113, %c0, %c0_88, %c0_89] : memref<2x8x2x256xf32, #tpu.memory_space<vmem>>, vector<1x1x2x256xf32>
    %115 = vector.shape_cast %114 : vector<1x1x2x256xf32> to vector<2x256xf32>
    %116 = arith.index_cast %9 : i32 to index
    %c1 = arith.constant 1 : index
    %c0_90 = arith.constant 0 : index
    %c0_91 = arith.constant 0 : index
    %117 = vector.load %arg5[%116, %c1, %c0_90, %c0_91] : memref<2x8x2x256xf32, #tpu.memory_space<vmem>>, vector<1x1x2x256xf32>
    %118 = vector.shape_cast %117 : vector<1x1x2x256xf32> to vector<2x256xf32>
    %119 = arith.addf %115, %118 : vector<2x256xf32>
    %120 = arith.index_cast %9 : i32 to index
    %c2 = arith.constant 2 : index
    %c0_92 = arith.constant 0 : index
    %c0_93 = arith.constant 0 : index
    %121 = vector.load %arg5[%120, %c2, %c0_92, %c0_93] : memref<2x8x2x256xf32, #tpu.memory_space<vmem>>, vector<1x1x2x256xf32>
    %122 = vector.shape_cast %121 : vector<1x1x2x256xf32> to vector<2x256xf32>
    %123 = arith.addf %119, %122 : vector<2x256xf32>
    %124 = arith.index_cast %9 : i32 to index
    %c3 = arith.constant 3 : index
    %c0_94 = arith.constant 0 : index
    %c0_95 = arith.constant 0 : index
    %125 = vector.load %arg5[%124, %c3, %c0_94, %c0_95] : memref<2x8x2x256xf32, #tpu.memory_space<vmem>>, vector<1x1x2x256xf32>
    %126 = vector.shape_cast %125 : vector<1x1x2x256xf32> to vector<2x256xf32>
    %127 = arith.addf %123, %126 : vector<2x256xf32>
    %128 = arith.index_cast %9 : i32 to index
    %c4 = arith.constant 4 : index
    %c0_96 = arith.constant 0 : index
    %c0_97 = arith.constant 0 : index
    %129 = vector.load %arg5[%128, %c4, %c0_96, %c0_97] : memref<2x8x2x256xf32, #tpu.memory_space<vmem>>, vector<1x1x2x256xf32>
    %130 = vector.shape_cast %129 : vector<1x1x2x256xf32> to vector<2x256xf32>
    %131 = arith.addf %127, %130 : vector<2x256xf32>
    %132 = arith.index_cast %9 : i32 to index
    %c5 = arith.constant 5 : index
    %c0_98 = arith.constant 0 : index
    %c0_99 = arith.constant 0 : index
    %133 = vector.load %arg5[%132, %c5, %c0_98, %c0_99] : memref<2x8x2x256xf32, #tpu.memory_space<vmem>>, vector<1x1x2x256xf32>
    %134 = vector.shape_cast %133 : vector<1x1x2x256xf32> to vector<2x256xf32>
    %135 = arith.addf %131, %134 : vector<2x256xf32>
    %136 = arith.index_cast %9 : i32 to index
    %c6 = arith.constant 6 : index
    %c0_100 = arith.constant 0 : index
    %c0_101 = arith.constant 0 : index
    %137 = vector.load %arg5[%136, %c6, %c0_100, %c0_101] : memref<2x8x2x256xf32, #tpu.memory_space<vmem>>, vector<1x1x2x256xf32>
    %138 = vector.shape_cast %137 : vector<1x1x2x256xf32> to vector<2x256xf32>
    %139 = arith.addf %135, %138 : vector<2x256xf32>
    %140 = arith.index_cast %9 : i32 to index
    %c7 = arith.constant 7 : index
    %c0_102 = arith.constant 0 : index
    %c0_103 = arith.constant 0 : index
    %141 = vector.load %arg5[%140, %c7, %c0_102, %c0_103] : memref<2x8x2x256xf32, #tpu.memory_space<vmem>>, vector<1x1x2x256xf32>
    %142 = vector.shape_cast %141 : vector<1x1x2x256xf32> to vector<2x256xf32>
    %143 = arith.addf %139, %142 : vector<2x256xf32>
    %c0_i32_104 = arith.constant 0 : i32
    %144 = arith.cmpi eq, %arg1, %c0_i32_104 : i32
    %145 = arith.extui %144 : i1 to i32
    %c0_i32_105 = arith.constant 0 : i32
    %146 = arith.cmpi ne, %145, %c0_i32_105 : i32
    scf.if %146 {
      %c0_110 = arith.constant 0 : index
      %c0_111 = arith.constant 0 : index
      %153 = vector.load %arg7[%c0_110, %c0_111] : memref<2x256xf32, #tpu.memory_space<vmem>>, vector<2x256xf32>
      tpu.vector_store %arg7[%c0_110, %c0_111], %143 {strides = array<i32>} : memref<2x256xf32, #tpu.memory_space<vmem>>, vector<2x256xf32>,
    } else {
    }
    %c0_i32_106 = arith.constant 0 : i32
    %147 = arith.cmpi ne, %arg1, %c0_i32_106 : i32
    %148 = arith.extui %147 : i1 to i32
    %c0_i32_107 = arith.constant 0 : i32
    %149 = arith.cmpi ne, %148, %c0_i32_107 : i32
    scf.if %149 {
      %c0_110 = arith.constant 0 : index
      %c0_111 = arith.constant 0 : index
      %153 = vector.load %arg7[%c0_110, %c0_111] : memref<2x256xf32, #tpu.memory_space<vmem>>, vector<2x256xf32>
      %154 = arith.addf %153, %143 : vector<2x256xf32>
      %c0_112 = arith.constant 0 : index
      %c0_113 = arith.constant 0 : index
      %155 = vector.load %arg7[%c0_112, %c0_113] : memref<2x256xf32, #tpu.memory_space<vmem>>, vector<2x256xf32>
      tpu.vector_store %arg7[%c0_112, %c0_113], %154 {strides = array<i32>} : memref<2x256xf32, #tpu.memory_space<vmem>>, vector<2x256xf32>,
    } else {
    }
    %c0_i32_108 = arith.constant 0 : i32
    %150 = arith.cmpi eq, %arg1, %c0_i32_108 : i32
    %151 = arith.extui %150 : i1 to i32
    %c0_i32_109 = arith.constant 0 : i32
    %152 = arith.cmpi ne, %151, %c0_i32_109 : i32
    scf.if %152 {
      %c0_110 = arith.constant 0 : index
      %c0_111 = arith.constant 0 : index
      %153 = vector.load %arg7[%c0_110, %c0_111] : memref<2x256xf32, #tpu.memory_space<vmem>>, vector<2x256xf32>
      %c0_112 = arith.constant 0 : index
      %c0_113 = arith.constant 0 : index
      %154 = vector.load %arg4[%c0_112, %c0_113] : memref<2x256xf32, #tpu.memory_space<vmem>>, vector<2x256xf32>
      tpu.vector_store %arg4[%c0_112, %c0_113], %153 {strides = array<i32>} : memref<2x256xf32, #tpu.memory_space<vmem>>, vector<2x256xf32>,
    } else {
    }
    return
  }
  func.func @transform_1(%arg0: i32, %arg1: i32, %arg2: memref<16xi32, #tpu.memory_space<smem>>) -> (i32, i32) {
    %c0_i32 = arith.constant 0 : i32
    %c0_i32_0 = arith.constant 0 : i32
    return %arg0, %c0_i32 : i32, i32
  }
}

</mosaic_0001>

<llo_original>
// kernel: tpu_custom_call.1
$region0: #{tpu_custom_call.1}
  #allocation0 [shape = 'u32[]', space=smem, size = 0x4, offset = 0x4, fixed_abs, tag = 'smem constant byte address 0x4 - core index']
  #allocation1 [shape = 'u32[144,128]{1,0:T(1,128)}', space=vmem, size = 0x12000, scoped, tag = 'internal scratch']
  #allocation2 [shape = 'f32[2,8,2,256]{3,2,1,0:T(2,128)}', space=vmem, size = 0x8000, scoped, tag = 'scratch operand']
  #allocation3 [shape = 's32[2]{0}', space=sflag, size = 0x8, scoped, tag = 'scratch operand']
  #allocation4 [shape = 'f32[2,256]{1,0:T(2,128)}', space=vmem, size = 0x800, scoped, tag = 'scratch operand']
  #allocation5 [shape = 's32[1]{0}', space=sflag, size = 0x4, scoped, tag = 'scoped memory for tpu_custom_call.1']
  #allocation6 [shape = 'u8[512]{0}', space=smem, size = 0x200, scoped, tag = 'prefetched SMEM operand 0']
  #allocation9 [shape = 's32[]', space=sflag, size = 0x4, offset = 0, fixed_abs, tag = 'sflag constant byte address 0x0 - dummy sync flag']
  #allocation10 [shape = 's32[]', space=sflag, size = 0x4, offset = 0, fixed_abs, tag = 'sflag constant byte address 0x0 - dummy sync flag']
  #allocation11 [shape = 's32[]', space=sflag, size = 0x4, offset = 0, fixed_abs, tag = 'sflag constant byte address 0x0 - dummy sync flag']
  #allocation12 [shape = 's32[]', space=sflag, size = 0x4, offset = 0, fixed_abs, tag = 'sflag constant byte address 0x0 - dummy sync flag']
  #allocation13 [shape = 's32[]', space=sflag, size = 0x4, offset = 0, fixed_abs, tag = 'sflag constant byte address 0x0 - dummy sync flag']
  #allocation14 [shape = 's32[]', space=sflag, size = 0x4, offset = 0, fixed_abs, tag = 'sflag constant byte address 0x0 - dummy sync flag']
  #allocation15 [shape = 's32[]', space=sflag, size = 0x4, offset = 0, fixed_abs, tag = 'sflag constant byte address 0x0 - dummy sync flag']
  #allocation16 [shape = 's32[]', space=sflag, size = 0x4, offset = 0, fixed_abs, tag = 'sflag constant byte address 0x0 - dummy sync flag']
  #allocation17 [shape = 's32[]', space=sflag, size = 0x4, offset = 0, fixed_abs, tag = 'sflag constant byte address 0x0 - dummy sync flag']
  #allocation18 [shape = 's32[]', space=sflag, size = 0x4, offset = 0, fixed_abs, tag = 'sflag constant byte address 0x0 - dummy sync flag']
  #allocation19 [shape = 's32[]', space=sflag, size = 0x4, offset = 0, fixed_abs, tag = 'sflag constant byte address 0x0 - dummy sync flag']
  #allocation20 [shape = 's32[]', space=sflag, size = 0x4, offset = 0, fixed_abs, tag = 'sflag constant byte address 0x0 - dummy sync flag']
  #allocation21 [shape = 's32[]', space=sflag, size = 0x4, offset = 0, fixed_abs, tag = 'sflag constant byte address 0x0 - dummy sync flag']
  #allocation22 [shape = 's32[]', space=sflag, size = 0x4, offset = 0, fixed_abs, tag = 'sflag constant byte address 0x0 - dummy sync flag']
  #allocation23 [shape = 's32[]', space=sflag, size = 0x4, offset = 0, fixed_abs, tag = 'sflag constant byte address 0x0 - dummy sync flag']
  #allocation24 [shape = 's32[]', space=sflag, size = 0x4, offset = 0, fixed_abs, tag = 'sflag constant byte address 0x0 - dummy sync flag']
  #allocation25 [shape = 's32[]', space=sflag, size = 0x4, offset = 0, fixed_abs, tag = 'sflag constant byte address 0x0 - dummy sync flag']
  #allocation26 [shape = 's32[]', space=sflag, size = 0x4, offset = 0, fixed_abs, tag = 'sflag constant byte address 0x0 - dummy sync flag']
  #allocation27 [shape = 's32[]', space=sflag, size = 0x4, offset = 0, fixed_abs, tag = 'sflag constant byte address 0x0 - dummy sync flag']
  #allocation28 [shape = 's32[]', space=sflag, size = 0x4, offset = 0, fixed_abs, tag = 'sflag constant byte address 0x0 - dummy sync flag']
  #allocation29 [shape = 's32[]', space=sflag, size = 0x4, offset = 0, fixed_abs, tag = 'sflag constant byte address 0x0 - dummy sync flag']
  #allocation30 [shape = 's32[]', space=sflag, size = 0x4, offset = 0, fixed_abs, tag = 'sflag constant byte address 0x0 - dummy sync flag']
  #allocation31 [shape = 's32[]', space=sflag, size = 0x4, offset = 0, fixed_abs, tag = 'sflag constant byte address 0x0 - dummy sync flag']
  #allocation32 [shape = 's32[]', space=sflag, size = 0x4, offset = 0, fixed_abs, tag = 'sflag constant byte address 0x0 - dummy sync flag']
  #allocation33 [shape = 's32[]', space=sflag, size = 0x4, offset = 0, fixed_abs, tag = 'sflag constant byte address 0x0 - dummy sync flag']
  #allocation34 [shape = 's32[]', space=sflag, size = 0x4, offset = 0, fixed_abs, tag = 'sflag constant byte address 0x0 - dummy sync flag']
  #allocation35 [shape = 's32[]', space=sflag, size = 0x4, offset = 0, fixed_abs, tag = 'sflag constant byte address 0x0 - dummy sync flag']
  #allocation36 [shape = 's32[]', space=sflag, size = 0x4, offset = 0, fixed_abs, tag = 'sflag constant byte address 0x0 - dummy sync flag']
  #allocation37 [shape = 's32[]', space=sflag, size = 0x4, offset = 0, fixed_abs, tag = 'sflag constant byte address 0x0 - dummy sync flag']
  #allocation38 [shape = 's32[]', space=sflag, size = 0x4, offset = 0, fixed_abs, tag = 'sflag constant byte address 0x0 - dummy sync flag']
  #allocation39 [shape = 's32[]', space=sflag, size = 0x4, offset = 0, fixed_abs, tag = 'sflag constant byte address 0x0 - dummy sync flag']
  #allocation40 [shape = 's32[]', space=sflag, size = 0x4, offset = 0, fixed_abs, tag = 'sflag constant byte address 0x0 - dummy sync flag']
  %s0 = inlined_call_operand.hbm [shape: s32[16], index: 0, kind: input, shape index: {}]
  %s1 = inlined_call_operand.hbm [shape: f32[128,256], index: 1, kind: input, shape index: {}]
  %s2 = inlined_call_operand.hbm [shape: f32[2,256], index: 2, kind: output, shape index: {}]
  %s3 = sld [smem:[#allocation0]]
  $region30: #{tpu_custom_call.1} parent=0
    _
  %s5 = ssub.s32 1, %s3
  %s6 = scalar_select 0, %s5, %s3
  %8 = dma.hbm_to_smem %s0, 16, [#allocation6], [#allocation5]
  %9 = dma.done [#allocation5], 16
  %10 = sfence
  $region1: #{tpu_custom_call.1} parent=0
    #allocation7 [shape = 'u8[2048]{0}', space=vmem, size = 0x800, scoped, tag = 'output window, operand 0, single buffered']
    #allocation8 [shape = 's32[1]{0}', space=sflag, size = 0x4, scoped, tag = 'scoped memory for tpu_custom_call.1']
    %11 = vsyncpa [#allocation8], 0
    %s12 = ssub.s32 0, 0
    %s13 = ssub.s32 0, 0
    %p14 = scmp.ne.s32.totalorder 0, 0
    %p15 = scmp.lt.s32.totalorder 0, 0
    %p16 = pnand %p15, %p14
    %p17 = pneg %p16
    %s18 = sadd.s32 0, 2
    %s19 = scalar_select %p17, %s18, 0
    %p20 = scmp.eq.s32.totalorder 0, 0
    // Predicated region
    $region2: #{tpu_custom_call.1} parent=1 // pred_check
      %p21 = pneg %p20
    $region3: #{tpu_custom_call.1} parent=1 // pred_check_branch
      %23 = sbr.rel (%p21) target = $region5
    $region4: #{tpu_custom_call.1} parent=1 // pred_region
      %s24 = smul.u32 0, 16
      %s25 = smul.u32 0, 8
      %s26 = sadd.s32 %s24, %s25
      %s27 = sld [smem:[#allocation6 + %s26]]
      %s28 = sshrl.u32 %s27, 3
      %s29 = sand.u32 %s27, 7
      %s30 = smul.u32 %s28, 16
      %s31 = sadd.s32 %s29, %s30
      %s32 = smul.addr %s31, 16
      %s33 = scalar_lea.hbm %s1, %s32
      %s34 = smul.u32 %s19, 32
      %s35 = scalar_lea.vmem [#allocation2], %s34
      %s36 = scalar_lea.sflag [#allocation3], %s19
      %s38 = sshll.u32 %s35, 4
      %s39 = int_to_ptr.vmem [resolvable:$true] %s38
      %41 = dma.hbm_to_vmem [thread:$0]  %s33, 32, %s39, %s36, 128, 32, 1
      %s42 = sadd.s32 %s26, 1
      %s43 = sld [smem:[#allocation6 + %s42]]
      %s44 = sshrl.u32 %s43, 3
      %s45 = sand.u32 %s43, 7
      %s46 = smul.u32 %s44, 16
      %s47 = sadd.s32 %s45, %s46
      %s48 = smul.addr %s47, 16
      %s49 = scalar_lea.hbm %s1, %s48
      %s50 = sadd.s32 4, %s34
      %s51 = scalar_lea.vmem [#allocation2], %s50
      %s53 = sshll.u32 %s51, 4
      %s54 = int_to_ptr.vmem [resolvable:$true] %s53
      %56 = dma.hbm_to_vmem [thread:$0]  %s49, 32, %s54, %s36, 128, 32, 1
      %s57 = sadd.s32 %s26, 2
      %s58 = sld [smem:[#allocation6 + %s57]]
      %s59 = sshrl.u32 %s58, 3
      %s60 = sand.u32 %s58, 7
      %s61 = smul.u32 %s59, 16
      %s62 = sadd.s32 %s60, %s61
      %s63 = smul.addr %s62, 16
      %s64 = scalar_lea.hbm %s1, %s63
      %s65 = sadd.s32 8, %s34
      %s66 = scalar_lea.vmem [#allocation2], %s65
      %s68 = sshll.u32 %s66, 4
      %s69 = int_to_ptr.vmem [resolvable:$true] %s68
      %71 = dma.hbm_to_vmem [thread:$0]  %s64, 32, %s69, %s36, 128, 32, 1
      %s72 = sadd.s32 %s26, 3
      %s73 = sld [smem:[#allocation6 + %s72]]
      %s74 = sshrl.u32 %s73, 3
      %s75 = sand.u32 %s73, 7
      %s76 = smul.u32 %s74, 16
      %s77 = sadd.s32 %s75, %s76
      %s78 = smul.addr %s77, 16
      %s79 = scalar_lea.hbm %s1, %s78
      %s80 = sadd.s32 12, %s34
      %s81 = scalar_lea.vmem [#allocation2], %s80
      %s83 = sshll.u32 %s81, 4
      %s84 = int_to_ptr.vmem [resolvable:$true] %s83
      %86 = dma.hbm_to_vmem [thread:$0]  %s79, 32, %s84, %s36, 128, 32, 1
      %s87 = sadd.s32 %s26, 4
      %s88 = sld [smem:[#allocation6 + %s87]]
      %s89 = sshrl.u32 %s88, 3
      %s90 = sand.u32 %s88, 7
      %s91 = smul.u32 %s89, 16
      %s92 = sadd.s32 %s90, %s91
      %s93 = smul.addr %s92, 16
      %s94 = scalar_lea.hbm %s1, %s93
      %s95 = sadd.s32 16, %s34
      %s96 = scalar_lea.vmem [#allocation2], %s95
      %s98 = sshll.u32 %s96, 4
      %s99 = int_to_ptr.vmem [resolvable:$true] %s98
      %101 = dma.hbm_to_vmem [thread:$0]  %s94, 32, %s99, %s36, 128, 32, 1
      %s102 = sadd.s32 %s26, 5
      %s103 = sld [smem:[#allocation6 + %s102]]
      %s104 = sshrl.u32 %s103, 3
      %s105 = sand.u32 %s103, 7
      %s106 = smul.u32 %s104, 16
      %s107 = sadd.s32 %s105, %s106
      %s108 = smul.addr %s107, 16
      %s109 = scalar_lea.hbm %s1, %s108
      %s110 = sadd.s32 20, %s34
      %s111 = scalar_lea.vmem [#allocation2], %s110
      %s113 = sshll.u32 %s111, 4
      %s114 = int_to_ptr.vmem [resolvable:$true] %s113
      %116 = dma.hbm_to_vmem [thread:$0]  %s109, 32, %s114, %s36, 128, 32, 1
      %s117 = sadd.s32 %s26, 6
      %s118 = sld [smem:[#allocation6 + %s117]]
      %s119 = sshrl.u32 %s118, 3
      %s120 = sand.u32 %s118, 7
      %s121 = smul.u32 %s119, 16
      %s122 = sadd.s32 %s120, %s121
      %s123 = smul.addr %s122, 16
      %s124 = scalar_lea.hbm %s1, %s123
      %s125 = sadd.s32 24, %s34
      %s126 = scalar_lea.vmem [#allocation2], %s125
      %s128 = sshll.u32 %s126, 4
      %s129 = int_to_ptr.vmem [resolvable:$true] %s128
      %131 = dma.hbm_to_vmem [thread:$0]  %s124, 32, %s129, %s36, 128, 32, 1
      %s132 = sadd.s32 %s26, 7
      %s133 = sld [smem:[#allocation6 + %s132]]
      %s134 = sshrl.u32 %s133, 3
      %s135 = sand.u32 %s133, 7
      %s136 = smul.u32 %s134, 16
      %s137 = sadd.s32 %s135, %s136
      %s138 = smul.addr %s137, 16
      %s139 = scalar_lea.hbm %s1, %s138
      %s140 = sadd.s32 28, %s34
      %s141 = scalar_lea.vmem [#allocation2], %s140
      %s143 = sshll.u32 %s141, 4
      %s144 = int_to_ptr.vmem [resolvable:$true] %s143
      %146 = dma.hbm_to_vmem [thread:$0]  %s139, 32, %s144, %s36, 128, 32, 1
      %s147 = smul.u32 0, 2
      %s148 = sadd.s32 %s147, 1
      %s149 = smul.u32 %s148, 8
      %s150 = sadd.s32 %s149, %s25
      %s151 = sld [smem:[#allocation6 + %s150]]
      %s152 = sshrl.u32 %s151, 3
      %s153 = sand.u32 %s151, 7
      %s154 = smul.u32 %s152, 16
      %s155 = sadd.s32 %s153, %s154
      %s156 = smul.addr %s155, 16
      %s157 = scalar_lea.hbm %s1, %s156
      %s158 = sadd.s32 1, %s34
      %s159 = scalar_lea.vmem [#allocation2], %s158
      %s161 = sshll.u32 %s159, 4
      %s162 = int_to_ptr.vmem [resolvable:$true] %s161
      %164 = dma.hbm_to_vmem [thread:$0]  %s157, 32, %s162, %s36, 128, 32, 1
      %s165 = sadd.s32 %s150, 1
      %s166 = sld [smem:[#allocation6 + %s165]]
      %s167 = sshrl.u32 %s166, 3
      %s168 = sand.u32 %s166, 7
      %s169 = smul.u32 %s167, 16
      %s170 = sadd.s32 %s168, %s169
      %s171 = smul.addr %s170, 16
      %s172 = scalar_lea.hbm %s1, %s171
      %s173 = sadd.s32 5, %s34
      %s174 = scalar_lea.vmem [#allocation2], %s173
      %s176 = sshll.u32 %s174, 4
      %s177 = int_to_ptr.vmem [resolvable:$true] %s176
      %179 = dma.hbm_to_vmem [thread:$0]  %s172, 32, %s177, %s36, 128, 32, 1
      %s180 = sadd.s32 %s150, 2
      %s181 = sld [smem:[#allocation6 + %s180]]
      %s182 = sshrl.u32 %s181, 3
      %s183 = sand.u32 %s181, 7
      %s184 = smul.u32 %s182, 16
      %s185 = sadd.s32 %s183, %s184
      %s186 = smul.addr %s185, 16
      %s187 = scalar_lea.hbm %s1, %s186
      %s188 = sadd.s32 9, %s34
      %s189 = scalar_lea.vmem [#allocation2], %s188
      %s191 = sshll.u32 %s189, 4
      %s192 = int_to_ptr.vmem [resolvable:$true] %s191
      %194 = dma.hbm_to_vmem [thread:$0]  %s187, 32, %s192, %s36, 128, 32, 1
      %s195 = sadd.s32 %s150, 3
      %s196 = sld [smem:[#allocation6 + %s195]]
      %s197 = sshrl.u32 %s196, 3
      %s198 = sand.u32 %s196, 7
      %s199 = smul.u32 %s197, 16
      %s200 = sadd.s32 %s198, %s199
      %s201 = smul.addr %s200, 16
      %s202 = scalar_lea.hbm %s1, %s201
      %s203 = sadd.s32 13, %s34
      %s204 = scalar_lea.vmem [#allocation2], %s203
      %s206 = sshll.u32 %s204, 4
      %s207 = int_to_ptr.vmem [resolvable:$true] %s206
      %209 = dma.hbm_to_vmem [thread:$0]  %s202, 32, %s207, %s36, 128, 32, 1
      %s210 = sadd.s32 %s150, 4
      %s211 = sld [smem:[#allocation6 + %s210]]
      %s212 = sshrl.u32 %s211, 3
      %s213 = sand.u32 %s211, 7
      %s214 = smul.u32 %s212, 16
      %s215 = sadd.s32 %s213, %s214
      %s216 = smul.addr %s215, 16
      %s217 = scalar_lea.hbm %s1, %s216
      %s218 = sadd.s32 17, %s34
      %s219 = scalar_lea.vmem [#allocation2], %s218
      %s221 = sshll.u32 %s219, 4
      %s222 = int_to_ptr.vmem [resolvable:$true] %s221
      %224 = dma.hbm_to_vmem [thread:$0]  %s217, 32, %s222, %s36, 128, 32, 1
      %s225 = sadd.s32 %s150, 5
      %s226 = sld [smem:[#allocation6 + %s225]]
      %s227 = sshrl.u32 %s226, 3
      %s228 = sand.u32 %s226, 7
      %s229 = smul.u32 %s227, 16
      %s230 = sadd.s32 %s228, %s229
      %s231 = smul.addr %s230, 16
      %s232 = scalar_lea.hbm %s1, %s231
      %s233 = sadd.s32 21, %s34
      %s234 = scalar_lea.vmem [#allocation2], %s233
      %s236 = sshll.u32 %s234, 4
      %s237 = int_to_ptr.vmem [resolvable:$true] %s236
      %239 = dma.hbm_to_vmem [thread:$0]  %s232, 32, %s237, %s36, 128, 32, 1
      %s240 = sadd.s32 %s150, 6
      %s241 = sld [smem:[#allocation6 + %s240]]
      %s242 = sshrl.u32 %s241, 3
      %s243 = sand.u32 %s241, 7
      %s244 = smul.u32 %s242, 16
      %s245 = sadd.s32 %s243, %s244
      %s246 = smul.addr %s245, 16
      %s247 = scalar_lea.hbm %s1, %s246
      %s248 = sadd.s32 25, %s34
      %s249 = scalar_lea.vmem [#allocation2], %s248
      %s251 = sshll.u32 %s249, 4
      %s252 = int_to_ptr.vmem [resolvable:$true] %s251
      %254 = dma.hbm_to_vmem [thread:$0]  %s247, 32, %s252, %s36, 128, 32, 1
      %s255 = sadd.s32 %s150, 7
      %s256 = sld [smem:[#allocation6 + %s255]]
      %s257 = sshrl.u32 %s256, 3
      %s258 = sand.u32 %s256, 7
      %s259 = smul.u32 %s257, 16
      %s260 = sadd.s32 %s258, %s259
      %s261 = smul.addr %s260, 16
      %s262 = scalar_lea.hbm %s1, %s261
      %s263 = sadd.s32 29, %s34
      %s264 = scalar_lea.vmem [#allocation2], %s263
      %s266 = sshll.u32 %s264, 4
      %s267 = int_to_ptr.vmem [resolvable:$true] %s266
      %269 = dma.hbm_to_vmem [thread:$0]  %s262, 32, %s267, %s36, 128, 32, 1
    $region5: #{tpu_custom_call.1} parent=1 // pred_fallthru
      _
    %s270 = sadd.s32 0, 1
    %p271 = scmp.lt.s32.totalorder %s270, 1
    // Predicated region
    $region6: #{tpu_custom_call.1} parent=1 // pred_check
      %p272 = pneg %p271
    $region7: #{tpu_custom_call.1} parent=1 // pred_check_branch
      %274 = sbr.rel (%p272) target = $region9
    $region8: #{tpu_custom_call.1} parent=1 // pred_region
      %s275 = ssub.s32 1, %s19
      %s276 = smul.u32 0, 16
      %s277 = smul.u32 %s270, 8
      %s278 = sadd.s32 %s276, %s277
      %s279 = sld [smem:[#allocation6 + %s278]]
      %s280 = sshrl.u32 %s279, 3
      %s281 = sand.u32 %s279, 7
      %s282 = smul.u32 %s280, 16
      %s283 = sadd.s32 %s281, %s282
      %s284 = smul.addr %s283, 16
      %s285 = scalar_lea.hbm %s1, %s284
      %s286 = smul.u32 %s275, 32
      %s287 = scalar_lea.vmem [#allocation2], %s286
      %s288 = scalar_lea.sflag [#allocation3], %s275
      %s290 = sshll.u32 %s287, 4
      %s291 = int_to_ptr.vmem [resolvable:$true] %s290
      %293 = dma.hbm_to_vmem [thread:$0]  %s285, 32, %s291, %s288, 128, 32, 1
      %s294 = sadd.s32 %s278, 1
      %s295 = sld [smem:[#allocation6 + %s294]]
      %s296 = sshrl.u32 %s295, 3
      %s297 = sand.u32 %s295, 7
      %s298 = smul.u32 %s296, 16
      %s299 = sadd.s32 %s297, %s298
      %s300 = smul.addr %s299, 16
      %s301 = scalar_lea.hbm %s1, %s300
      %s302 = sadd.s32 4, %s286
      %s303 = scalar_lea.vmem [#allocation2], %s302
      %s305 = sshll.u32 %s303, 4
      %s306 = int_to_ptr.vmem [resolvable:$true] %s305
      %308 = dma.hbm_to_vmem [thread:$0]  %s301, 32, %s306, %s288, 128, 32, 1
      %s309 = sadd.s32 %s278, 2
      %s310 = sld [smem:[#allocation6 + %s309]]
      %s311 = sshrl.u32 %s310, 3
      %s312 = sand.u32 %s310, 7
      %s313 = smul.u32 %s311, 16
      %s314 = sadd.s32 %s312, %s313
      %s315 = smul.addr %s314, 16
      %s316 = scalar_lea.hbm %s1, %s315
      %s317 = sadd.s32 8, %s286
      %s318 = scalar_lea.vmem [#allocation2], %s317
      %s320 = sshll.u32 %s318, 4
      %s321 = int_to_ptr.vmem [resolvable:$true] %s320
      %323 = dma.hbm_to_vmem [thread:$0]  %s316, 32, %s321, %s288, 128, 32, 1
      %s324 = sadd.s32 %s278, 3
      %s325 = sld [smem:[#allocation6 + %s324]]
      %s326 = sshrl.u32 %s325, 3
      %s327 = sand.u32 %s325, 7
      %s328 = smul.u32 %s326, 16
      %s329 = sadd.s32 %s327, %s328
      %s330 = smul.addr %s329, 16
      %s331 = scalar_lea.hbm %s1, %s330
      %s332 = sadd.s32 12, %s286
      %s333 = scalar_lea.vmem [#allocation2], %s332
      %s335 = sshll.u32 %s333, 4
      %s336 = int_to_ptr.vmem [resolvable:$true] %s335
      %338 = dma.hbm_to_vmem [thread:$0]  %s331, 32, %s336, %s288, 128, 32, 1
      %s339 = sadd.s32 %s278, 4
      %s340 = sld [smem:[#allocation6 + %s339]]
      %s341 = sshrl.u32 %s340, 3
      %s342 = sand.u32 %s340, 7
      %s343 = smul.u32 %s341, 16
      %s344 = sadd.s32 %s342, %s343
      %s345 = smul.addr %s344, 16
      %s346 = scalar_lea.hbm %s1, %s345
      %s347 = sadd.s32 16, %s286
      %s348 = scalar_lea.vmem [#allocation2], %s347
      %s350 = sshll.u32 %s348, 4
      %s351 = int_to_ptr.vmem [resolvable:$true] %s350
      %353 = dma.hbm_to_vmem [thread:$0]  %s346, 32, %s351, %s288, 128, 32, 1
      %s354 = sadd.s32 %s278, 5
      %s355 = sld [smem:[#allocation6 + %s354]]
      %s356 = sshrl.u32 %s355, 3
      %s357 = sand.u32 %s355, 7
      %s358 = smul.u32 %s356, 16
      %s359 = sadd.s32 %s357, %s358
      %s360 = smul.addr %s359, 16
      %s361 = scalar_lea.hbm %s1, %s360
      %s362 = sadd.s32 20, %s286
      %s363 = scalar_lea.vmem [#allocation2], %s362
      %s365 = sshll.u32 %s363, 4
      %s366 = int_to_ptr.vmem [resolvable:$true] %s365
      %368 = dma.hbm_to_vmem [thread:$0]  %s361, 32, %s366, %s288, 128, 32, 1
      %s369 = sadd.s32 %s278, 6
      %s370 = sld [smem:[#allocation6 + %s369]]
      %s371 = sshrl.u32 %s370, 3
      %s372 = sand.u32 %s370, 7
      %s373 = smul.u32 %s371, 16
      %s374 = sadd.s32 %s372, %s373
      %s375 = smul.addr %s374, 16
      %s376 = scalar_lea.hbm %s1, %s375
      %s377 = sadd.s32 24, %s286
      %s378 = scalar_lea.vmem [#allocation2], %s377
      %s380 = sshll.u32 %s378, 4
      %s381 = int_to_ptr.vmem [resolvable:$true] %s380
      %383 = dma.hbm_to_vmem [thread:$0]  %s376, 32, %s381, %s288, 128, 32, 1
      %s384 = sadd.s32 %s278, 7
      %s385 = sld [smem:[#allocation6 + %s384]]
      %s386 = sshrl.u32 %s385, 3
      %s387 = sand.u32 %s385, 7
      %s388 = smul.u32 %s386, 16
      %s389 = sadd.s32 %s387, %s388
      %s390 = smul.addr %s389, 16
      %s391 = scalar_lea.hbm %s1, %s390
      %s392 = sadd.s32 28, %s286
      %s393 = scalar_lea.vmem [#allocation2], %s392
      %s395 = sshll.u32 %s393, 4
      %s396 = int_to_ptr.vmem [resolvable:$true] %s395
      %398 = dma.hbm_to_vmem [thread:$0]  %s391, 32, %s396, %s288, 128, 32, 1
      %s399 = smul.u32 0, 2
      %s400 = sadd.s32 %s399, 1
      %s401 = smul.u32 %s400, 8
      %s402 = sadd.s32 %s401, %s277
      %s403 = sld [smem:[#allocation6 + %s402]]
      %s404 = sshrl.u32 %s403, 3
      %s405 = sand.u32 %s403, 7
      %s406 = smul.u32 %s404, 16
      %s407 = sadd.s32 %s405, %s406
      %s408 = smul.addr %s407, 16
      %s409 = scalar_lea.hbm %s1, %s408
      %s410 = sadd.s32 1, %s286
      %s411 = scalar_lea.vmem [#allocation2], %s410
      %s413 = sshll.u32 %s411, 4
      %s414 = int_to_ptr.vmem [resolvable:$true] %s413
      %416 = dma.hbm_to_vmem [thread:$0]  %s409, 32, %s414, %s288, 128, 32, 1
      %s417 = sadd.s32 %s402, 1
      %s418 = sld [smem:[#allocation6 + %s417]]
      %s419 = sshrl.u32 %s418, 3
      %s420 = sand.u32 %s418, 7
      %s421 = smul.u32 %s419, 16
      %s422 = sadd.s32 %s420, %s421
      %s423 = smul.addr %s422, 16
      %s424 = scalar_lea.hbm %s1, %s423
      %s425 = sadd.s32 5, %s286
      %s426 = scalar_lea.vmem [#allocation2], %s425
      %s428 = sshll.u32 %s426, 4
      %s429 = int_to_ptr.vmem [resolvable:$true] %s428
      %431 = dma.hbm_to_vmem [thread:$0]  %s424, 32, %s429, %s288, 128, 32, 1
      %s432 = sadd.s32 %s402, 2
      %s433 = sld [smem:[#allocation6 + %s432]]
      %s434 = sshrl.u32 %s433, 3
      %s435 = sand.u32 %s433, 7
      %s436 = smul.u32 %s434, 16
      %s437 = sadd.s32 %s435, %s436
      %s438 = smul.addr %s437, 16
      %s439 = scalar_lea.hbm %s1, %s438
      %s440 = sadd.s32 9, %s286
      %s441 = scalar_lea.vmem [#allocation2], %s440
      %s443 = sshll.u32 %s441, 4
      %s444 = int_to_ptr.vmem [resolvable:$true] %s443
      %446 = dma.hbm_to_vmem [thread:$0]  %s439, 32, %s444, %s288, 128, 32, 1
      %s447 = sadd.s32 %s402, 3
      %s448 = sld [smem:[#allocation6 + %s447]]
      %s449 = sshrl.u32 %s448, 3
      %s450 = sand.u32 %s448, 7
      %s451 = smul.u32 %s449, 16
      %s452 = sadd.s32 %s450, %s451
      %s453 = smul.addr %s452, 16
      %s454 = scalar_lea.hbm %s1, %s453
      %s455 = sadd.s32 13, %s286
      %s456 = scalar_lea.vmem [#allocation2], %s455
      %s458 = sshll.u32 %s456, 4
      %s459 = int_to_ptr.vmem [resolvable:$true] %s458
      %461 = dma.hbm_to_vmem [thread:$0]  %s454, 32, %s459, %s288, 128, 32, 1
      %s462 = sadd.s32 %s402, 4
      %s463 = sld [smem:[#allocation6 + %s462]]
      %s464 = sshrl.u32 %s463, 3
      %s465 = sand.u32 %s463, 7
      %s466 = smul.u32 %s464, 16
      %s467 = sadd.s32 %s465, %s466
      %s468 = smul.addr %s467, 16
      %s469 = scalar_lea.hbm %s1, %s468
      %s470 = sadd.s32 17, %s286
      %s471 = scalar_lea.vmem [#allocation2], %s470
      %s473 = sshll.u32 %s471, 4
      %s474 = int_to_ptr.vmem [resolvable:$true] %s473
      %476 = dma.hbm_to_vmem [thread:$0]  %s469, 32, %s474, %s288, 128, 32, 1
      %s477 = sadd.s32 %s402, 5
      %s478 = sld [smem:[#allocation6 + %s477]]
      %s479 = sshrl.u32 %s478, 3
      %s480 = sand.u32 %s478, 7
      %s481 = smul.u32 %s479, 16
      %s482 = sadd.s32 %s480, %s481
      %s483 = smul.addr %s482, 16
      %s484 = scalar_lea.hbm %s1, %s483
      %s485 = sadd.s32 21, %s286
      %s486 = scalar_lea.vmem [#allocation2], %s485
      %s488 = sshll.u32 %s486, 4
      %s489 = int_to_ptr.vmem [resolvable:$true] %s488
      %491 = dma.hbm_to_vmem [thread:$0]  %s484, 32, %s489, %s288, 128, 32, 1
      %s492 = sadd.s32 %s402, 6
      %s493 = sld [smem:[#allocation6 + %s492]]
      %s494 = sshrl.u32 %s493, 3
      %s495 = sand.u32 %s493, 7
      %s496 = smul.u32 %s494, 16
      %s497 = sadd.s32 %s495, %s496
      %s498 = smul.addr %s497, 16
      %s499 = scalar_lea.hbm %s1, %s498
      %s500 = sadd.s32 25, %s286
      %s501 = scalar_lea.vmem [#allocation2], %s500
      %s503 = sshll.u32 %s501, 4
      %s504 = int_to_ptr.vmem [resolvable:$true] %s503
      %506 = dma.hbm_to_vmem [thread:$0]  %s499, 32, %s504, %s288, 128, 32, 1
      %s507 = sadd.s32 %s402, 7
      %s508 = sld [smem:[#allocation6 + %s507]]
      %s509 = sshrl.u32 %s508, 3
      %s510 = sand.u32 %s508, 7
      %s511 = smul.u32 %s509, 16
      %s512 = sadd.s32 %s510, %s511
      %s513 = smul.addr %s512, 16
      %s514 = scalar_lea.hbm %s1, %s513
      %s515 = sadd.s32 29, %s286
      %s516 = scalar_lea.vmem [#allocation2], %s515
      %s518 = sshll.u32 %s516, 4
      %s519 = int_to_ptr.vmem [resolvable:$true] %s518
      %521 = dma.hbm_to_vmem [thread:$0]  %s514, 32, %s519, %s288, 128, 32, 1
    $region9: #{tpu_custom_call.1} parent=1 // pred_fallthru
      _
    %s522 = scalar_lea.sflag [#allocation3], %s19
    %524 = dma.done %s522, 32
    %526 = dma.done %s522, 32
    %528 = dma.done %s522, 32
    %530 = dma.done %s522, 32
    %532 = dma.done %s522, 32
    %534 = dma.done %s522, 32
    %536 = dma.done %s522, 32
    %538 = dma.done %s522, 32
    %540 = dma.done %s522, 32
    %542 = dma.done %s522, 32
    %544 = dma.done %s522, 32
    %546 = dma.done %s522, 32
    %548 = dma.done %s522, 32
    %550 = dma.done %s522, 32
    %552 = dma.done %s522, 32
    %554 = dma.done %s522, 32
    %s555 = smul.u32 %s19, 16
    %s556 = smul.addr %s555, 2
    %s557 = scalar_lea.vmem [#allocation2], %s556
    %v558 = vld [vmem:[%s557] sm:$0xf]
    %s559 = sadd.s32 2, %s555
    %s560 = smul.addr %s559, 2
    %s561 = scalar_lea.vmem [#allocation2], %s560
    %v562 = vld [vmem:[%s561] sm:$0xf]
    %v563 = vadd.f32 %v558, %v562
    %s564 = sadd.s32 4, %s555
    %s565 = smul.addr %s564, 2
    %s566 = scalar_lea.vmem [#allocation2], %s565
    %v567 = vld [vmem:[%s566] sm:$0xf]
    %v568 = vadd.f32 %v563, %v567
    %s569 = sadd.s32 6, %s555
    %s570 = smul.addr %s569, 2
    %s571 = scalar_lea.vmem [#allocation2], %s570
    %v572 = vld [vmem:[%s571] sm:$0xf]
    %v573 = vadd.f32 %v568, %v572
    %s574 = sadd.s32 8, %s555
    %s575 = smul.addr %s574, 2
    %s576 = scalar_lea.vmem [#allocation2], %s575
    %v577 = vld [vmem:[%s576] sm:$0xf]
    %v578 = vadd.f32 %v573, %v577
    %s579 = sadd.s32 10, %s555
    %s580 = smul.addr %s579, 2
    %s581 = scalar_lea.vmem [#allocation2], %s580
    %v582 = vld [vmem:[%s581] sm:$0xf]
    %v583 = vadd.f32 %v578, %v582
    %s584 = sadd.s32 12, %s555
    %s585 = smul.addr %s584, 2
    %s586 = scalar_lea.vmem [#allocation2], %s585
    %v587 = vld [vmem:[%s586] sm:$0xf]
    %v588 = vadd.f32 %v583, %v587
    %s589 = sadd.s32 14, %s555
    %s590 = smul.addr %s589, 2
    %s591 = scalar_lea.vmem [#allocation2], %s590
    %v592 = vld [vmem:[%s591] sm:$0xf]
    %v593 = vadd.f32 %v588, %v592
    // Predicated region
    $region10: #{tpu_custom_call.1} parent=1 // pred_check
      %p594 = pneg %p20
    $region11: #{tpu_custom_call.1} parent=1 // pred_check_branch
      %596 = sbr.rel (%p594) target = $region13
    $region12: #{tpu_custom_call.1} parent=1 // pred_region
      %597 = vst [vmem:[#allocation4] sm:$0xf] %v593
    $region13: #{tpu_custom_call.1} parent=1 // pred_fallthru
      _
    %p598 = scmp.ne.s32.totalorder 0, 0
    // Predicated region
    $region14: #{tpu_custom_call.1} parent=1 // pred_check
      %p599 = pneg %p598
    $region15: #{tpu_custom_call.1} parent=1 // pred_check_branch
      %601 = sbr.rel (%p599) target = $region17
    $region16: #{tpu_custom_call.1} parent=1 // pred_region
      %v602 = vld [vmem:[#allocation4] sm:$0xf]
      %v603 = vadd.f32 %v602, %v593
      %604 = vst [vmem:[#allocation4] sm:$0xf] %v603
    $region17: #{tpu_custom_call.1} parent=1 // pred_fallthru
      _
    // Predicated region
    $region18: #{tpu_custom_call.1} parent=1 // pred_check
      %p605 = pneg %p20
    $region19: #{tpu_custom_call.1} parent=1 // pred_check_branch
      %607 = sbr.rel (%p605) target = $region21
    $region20: #{tpu_custom_call.1} parent=1 // pred_region
      %v608 = vld [vmem:[#allocation4] sm:$0xf]
      %609 = vst [vmem:[#allocation7] sm:$0xf] %v608
    $region21: #{tpu_custom_call.1} parent=1 // pred_fallthru
      _
    // Predicated region
    $region22: #{tpu_custom_call.1} parent=1 // pred_check
      _
    $region23: #{tpu_custom_call.1} parent=1 // pred_check_branch
      %611 = sbr.rel (0) target = $region25
    $region24: #{tpu_custom_call.1} parent=1 // pred_region
      %s613 = ssub.s32 64, 64
      %614 = vsyncadd [#allocation8], %s613
      %s616 = sshll.u32 [#allocation7], 4
      %s617 = int_to_ptr.vmem [resolvable:$true] %s616
      %619 = dma.vmem_to_hbm [thread:$0]  %s617, 64, %s2, [#allocation8]
    $region25: #{tpu_custom_call.1} parent=1 // pred_fallthru
      _
    // Predicated region
    $region26: #{tpu_custom_call.1} parent=1 // pred_check
      _
    $region27: #{tpu_custom_call.1} parent=1 // pred_check_branch
      %621 = sbr.rel (0) target = $region29
    $region28: #{tpu_custom_call.1} parent=1 // pred_region
      %622 = dma.done [#allocation8], 64
    $region29: #{tpu_custom_call.1} parent=1 // pred_fallthru
      _
    %623 = vsyncpa [#allocation8], 1
  %624 = vsyncmov [#allocation3]
  %s625 = vpop.sfrf %624
  %p626 = scmp.eq.s32.totalorder %s625, 0
  %p627 = pneg %p626
  %629 = shalt.err (%p627)
  %s630 = scalar_lea.sflag [#allocation3], 1
  %631 = vsyncmov %s630
  %s632 = vpop.sfrf %631
  %p633 = scmp.eq.s32.totalorder %s632, 0
  %p634 = pneg %p633
  %636 = shalt.err (%p634)

</llo_original>
